<compile_context>
chip_gen: v6e
topology: v6e:2x2x1
jax: 0.10.0
libtpu: 0.0.40
codegen_flags: <defaults>
</compile_context>

<pallas_src>
import functools

import jax
import jax.numpy as jnp
from jax.experimental import pallas as pl
from jax.experimental.pallas import tpu as pltpu


_VMEM_LIMIT = 32 * 1024 * 1024  # safe scoped-VMEM budget on v5e/v6e/v7x


def _round_up(x, m):
    return ((x + m - 1) // m) * m


# ----------------------------------------------------------------------------
# Kernel 1: fused im2col-matmul conv + BatchNorm(eval, scale pre-folded) + ReLU
#   patches: (tm, K) bf16   w2d: (K, Cout) bf16 (scale folded)   bias: (1, Cout) f32
#   output:  (tm, Cout) bf16 (inter-stage activation)
# ----------------------------------------------------------------------------
def conv_bn_relu_kernel(patch_ref, w_ref, bias_ref, o_ref):
    acc = jnp.dot(patch_ref[...], w_ref[...], preferred_element_type=jnp.float32)
    o_ref[...] = jnp.maximum(acc + bias_ref[...], 0.0).astype(o_ref.dtype)


# ----------------------------------------------------------------------------
# Kernel 2: MaxPool2d(kernel=3, stride=2, pad=1), separable, on parity slabs.
#   ee/eo/oe/oo: (Hh, Wh, C) bf16 slabs y[2r,2s], y[2r,2s+1], y[2r+1,2s], y[2r+1,2s+1]
#   out: (Hh, Wh, C) f32; out[r,s] = max over rows {2r-1,2r,2r+1} x cols {2s-1,2s,2s+1}
# W-direction 3-max first (one -inf-filled shift per odd-col slab), then H-direction
# 3-max (one -inf-filled shift along the leading dim). All slices contiguous.
# ----------------------------------------------------------------------------
def maxpool3x3s2_kernel(ee_ref, eo_ref, oe_ref, oo_ref, o_ref):
    ee = ee_ref[...].astype(jnp.float32)
    eo = eo_ref[...].astype(jnp.float32)
    oe = oe_ref[...].astype(jnp.float32)
    oo = oo_ref[...].astype(jnp.float32)
    Hh, Wh, C = ee.shape

    neg_col = jnp.full((Hh, 1, C), -jnp.inf, dtype=jnp.float32)
    eo_left = jnp.concatenate([neg_col, eo[:, : Wh - 1, :]], axis=1)  # y[2r,   2s-1]
    oo_left = jnp.concatenate([neg_col, oo[:, : Wh - 1, :]], axis=1)  # y[2r+1, 2s-1]

    we = jnp.maximum(jnp.maximum(ee, eo), eo_left)   # W-max of row 2r
    wo = jnp.maximum(jnp.maximum(oe, oo), oo_left)   # W-max of row 2r+1

    neg_row = jnp.full((1, Wh, C), -jnp.inf, dtype=jnp.float32)
    wo_up = jnp.concatenate([neg_row, wo[: Hh - 1, :, :]], axis=0)    # W-max of row 2r-1

    o_ref[...] = jnp.maximum(jnp.maximum(we, wo), wo_up)


# ----------------------------------------------------------------------------
# Wrapper: layout changes + bf16 im2col (parity-ordered rows) are plain-JAX glue.
# ----------------------------------------------------------------------------
@functools.partial(jax.jit, static_argnames=("eps",))
def resnet152_shallow_forward(x_nchw, w, gamma, beta, mean, var, eps=1e-5):
    N, Cin, H, W = x_nchw.shape
    Cout, _, KH, KW = w.shape
    stride, pad = 2, 3

    Ho = (H + 2 * pad - KH) // stride + 1
    Wo = (W + 2 * pad - KW) // stride + 1
    assert Ho % 2 == 0 and Wo % 2 == 0, (
        "parity-split maxpool path assumes even conv-output spatial dims")
    Hh, Wh = Ho // 2, Wo // 2
    K = KH * KW * Cin  # 147 for the ResNet stem

    # NCHW -> NHWC, bf16 (halves all downstream patch bytes), pad spatially.
    x = jnp.transpose(x_nchw, (0, 2, 3, 1)).astype(jnp.bfloat16)
    x_pad = jnp.pad(x, ((0, 0), (pad, pad), (pad, pad), (0, 0)))

    # im2col with rows ordered (n, h_parity, h//2, w_parity, w//2) so the conv
    # output is already the maxpool's parity decomposition (no extra HBM pass).
    cols = []
    for i in range(KH):
        for j in range(KW):
            cols.append(
                jax.lax.slice(
                    x_pad,
                    (0, i, j, 0),
                    (N, i + stride * (Ho - 1) + 1, j + stride * (Wo - 1) + 1, Cin),
                    (1, stride, stride, 1),
                )
            )
    patches = jnp.stack(cols, axis=3).reshape(N, Ho, Wo, K)          # (kh,kw,c) ordering
    patches = patches.reshape(N, Hh, 2, Wh, 2, K).transpose(0, 2, 1, 4, 3, 5)
    patches = patches.reshape(N * Ho * Wo, K)                         # bf16, K unpadded

    # Fold BN scale into the conv weights; bias stays f32 for the epilogue.
    inv_std = 1.0 / jnp.sqrt(var + eps)
    scale = (gamma * inv_std).astype(jnp.float32)                     # (Cout,)
    bias = (beta - mean * scale).reshape(1, Cout).astype(jnp.float32)
    w2d = jnp.transpose(w, (2, 3, 1, 0)).reshape(K, Cout)             # (kh,kw,c) ordering
    w2d = (w2d * scale[None, :]).astype(jnp.bfloat16)

    M = N * Ho * Wo
    if M >= 1024:
        tm = 1024
    elif M >= 512:
        tm = 512
    else:
        tm = _round_up(M, 16)
    Mpad = _round_up(M, tm)
    if Mpad != M:
        patches = jnp.pad(patches, ((0, Mpad - M), (0, 0)))

    y2d = pl.pallas_call(
        conv_bn_relu_kernel,
        out_shape=jax.ShapeDtypeStruct((Mpad, Cout), jnp.bfloat16),
        grid=(Mpad // tm,),
        in_specs=[
            pl.BlockSpec((tm, K), lambda i: (i, 0)),
            pl.BlockSpec((K, Cout), lambda i: (0, 0)),
            pl.BlockSpec((1, Cout), lambda i: (0, 0)),
        ],
        out_specs=pl.BlockSpec((tm, Cout), lambda i: (i, 0)),
        compiler_params=pltpu.CompilerParams(
            dimension_semantics=("parallel",),
            vmem_limit_bytes=_VMEM_LIMIT,
        ),
    )(patches, w2d, bias)

    # Conv+BN+ReLU output, already parity-ordered: (N, h_par, Hh, w_par, Wh, Cout).
    y6 = y2d[:M].reshape(N, 2, Hh, 2, Wh, Cout)

    def parity_spec(ph, pw):
        return pl.BlockSpec(
            (None, None, Hh, None, Wh, Cout),
            lambda n, ph=ph, pw=pw: (n, ph, 0, pw, 0, 0),
        )

    pooled = pl.pallas_call(
        maxpool3x3s2_kernel,
        out_shape=jax.ShapeDtypeStruct((N, Hh, Wh, Cout), jnp.float32),
        grid=(N,),
        in_specs=[
            parity_spec(0, 0),  # ee: rows 2r,   cols 2s
            parity_spec(0, 1),  # eo: rows 2r,   cols 2s+1
            parity_spec(1, 0),  # oe: rows 2r+1, cols 2s
            parity_spec(1, 1),  # oo: rows 2r+1, cols 2s+1
        ],
        out_specs=pl.BlockSpec((None, Hh, Wh, Cout), lambda n: (n, 0, 0, 0)),
        compiler_params=pltpu.CompilerParams(
            dimension_semantics=("parallel",),
            vmem_limit_bytes=_VMEM_LIMIT,
        ),
    )(y6, y6, y6, y6)

    # back to PyTorch NCHW
    return jnp.transpose(pooled, (0, 3, 1, 2))


# ----------------------------------------------------------------------------
# Pure-JAX (f32, HIGHEST) reference for verification
# ----------------------------------------------------------------------------
def reference_forward(x_nchw, w, gamma, beta, mean, var, eps=1e-5):
    y = jax.lax.conv_general_dilated(
        x_nchw,
        w,
        window_strides=(2, 2),
        padding=[(3, 3), (3, 3)],
        dimension_numbers=("NCHW", "OIHW", "NCHW"),
        precision=jax.lax.Precision.HIGHEST,
    )
    inv_std = 1.0 / jnp.sqrt(var + eps)
    scale = (gamma * inv_std)[None, :, None, None]
    bias = (beta - mean * gamma * inv_std)[None, :, None, None]
    y = jnp.maximum(y * scale + bias, 0.0)
    y = jax.lax.reduce_window(
        y,
        -jnp.inf,
        jax.lax.max,
        window_dimensions=(1, 1, 3, 3),
        window_strides=(1, 1, 2, 2),
        padding=[(0, 0), (0, 0), (1, 1), (1, 1)],
    )
    return y


if __name__ == "__main__":
    key = jax.random.PRNGKey(0)
    kx, kw, kg, kb, km, kv = jax.random.split(key, 6)

    # Small demo shapes: N=2, Cin=3 (ResNet stem requires 3), 32x32 spatial.
    x = jax.random.normal(kx, (2, 3, 32, 32), jnp.float32)

    # Deterministic synthetic parameters (shapes fixed by the ResNet-152 stem).
    w = 0.05 * jax.random.normal(kw, (64, 3, 7, 7), jnp.float32)
    gamma = 1.0 + 0.1 * jax.random.normal(kg, (64,), jnp.float32)
    beta = 0.1 * jax.random.normal(kb, (64,), jnp.float32)
    running_mean = 0.1 * jax.random.normal(km, (64,), jnp.float32)
    running_var = jax.random.uniform(kv, (64,), jnp.float32, 0.5, 1.5)

    out = resnet152_shallow_forward(x, w, gamma, beta, running_mean, running_var)
    out = jax.block_until_ready(out)

    ref = reference_forward(x, w, gamma, beta, running_mean, running_var)
    assert out.shape == (2, 64, 8, 8), out.shape
    # bf16 MXU inputs + bf16 inter-stage activation vs f32 HIGHEST reference.
    max_err = float(jnp.max(jnp.abs(out - ref)))
    assert jnp.allclose(out, ref, rtol=5e-2, atol=5e-2), max_err
    print("KERNEL_OK")
</pallas_src>

<mosaic_0001>
module attributes {stable_mosaic.version = 11 : i64} {
  func.func @conv_bn_relu_kernel(%arg0: i32, %arg1: memref<512x147xbf16, #tpu.memory_space<vmem>>, %arg2: memref<147x64xbf16, #tpu.memory_space<vmem>>, %arg3: memref<1x64xf32, #tpu.memory_space<vmem>>, %arg4: memref<512x64xbf16, #tpu.memory_space<vmem>>) attributes {dimension_semantics = [#tpu.dimension_semantics<parallel>], iteration_bounds = array<i64: 1>, scalar_prefetch = 0 : i64, scratch_operands = 0 : i64, tpu.core_type = #tpu.core_type<tc>, window_params = [{transform_indices = @transform_0, window_bounds = array<i64: 512, 147>}, {pipeline_mode = #tpu.pipeline_mode<synchronous>, transform_indices = @transform_1, window_bounds = array<i64: 147, 64>}, {pipeline_mode = #tpu.pipeline_mode<synchronous>, transform_indices = @transform_2, window_bounds = array<i64: 1, 64>}, {transform_indices = @transform_3, window_bounds = array<i64: 512, 64>}]} {
    %c0 = arith.constant 0 : index
    %c0_0 = arith.constant 0 : index
    %0 = vector.load %arg1[%c0, %c0_0] : memref<512x147xbf16, #tpu.memory_space<vmem>>, vector<512x147xbf16>
    %c0_1 = arith.constant 0 : index
    %c0_2 = arith.constant 0 : index
    %1 = vector.load %arg2[%c0_1, %c0_2] : memref<147x64xbf16, #tpu.memory_space<vmem>>, vector<147x64xbf16>
    %cst = arith.constant dense<0.000000e+00> : vector<512x64xf32>
    %2 = tpu.matmul %0, %1, %cst {dimension_numbers = #tpu.dot_dimension_numbers<[1], [0], [0], [1], [0, 0, 1, 1], [], []>} : vector<512x147xbf16>, vector<147x64xbf16>, vector<512x64xf32> -> vector<512x64xf32>
    %c0_3 = arith.constant 0 : index
    %c0_4 = arith.constant 0 : index
    %3 = vector.load %arg3[%c0_3, %c0_4] : memref<1x64xf32, #tpu.memory_space<vmem>>, vector<1x64xf32>
    %4 = vector.broadcast %3 : vector<1x64xf32> to vector<512x64xf32>
    %5 = arith.addf %2, %4 : vector<512x64xf32>
    %cst_5 = arith.constant 0.000000e+00 : f32
    %6 = vector.broadcast %cst_5 : f32 to vector<512x64xf32>
    %7 = arith.maximumf %5, %6 : vector<512x64xf32>
    %8 = arith.truncf %7 : vector<512x64xf32> to vector<512x64xbf16>
    %c0_6 = arith.constant 0 : index
    %c0_7 = arith.constant 0 : index
    %9 = vector.load %arg4[%c0_6, %c0_7] : memref<512x64xbf16, #tpu.memory_space<vmem>>, vector<512x64xbf16>
    tpu.vector_store %arg4[%c0_6, %c0_7], %8 {strides = array<i32>} : memref<512x64xbf16, #tpu.memory_space<vmem>>, vector<512x64xbf16>,
    return
  }
  func.func @transform_0(%arg0: i32) -> (i32, i32) {
    %c0_i32 = arith.constant 0 : i32
    %c0_i32_0 = arith.constant 0 : i32
    return %arg0, %c0_i32 : i32, i32
  }
  func.func @transform_1(%arg0: i32) -> (i32, i32) {
    %c0_i32 = arith.constant 0 : i32
    %c0_i32_0 = arith.constant 0 : i32
    %c0_i32_1 = arith.constant 0 : i32
    return %c0_i32, %c0_i32_0 : i32, i32
  }
  func.func @transform_2(%arg0: i32) -> (i32, i32) {
    %c0_i32 = arith.constant 0 : i32
    %c0_i32_0 = arith.constant 0 : i32
    %c0_i32_1 = arith.constant 0 : i32
    return %c0_i32, %c0_i32_0 : i32, i32
  }
  func.func @transform_3(%arg0: i32) -> (i32, i32) {
    %c0_i32 = arith.constant 0 : i32
    %c0_i32_0 = arith.constant 0 : i32
    return %arg0, %c0_i32 : i32, i32
  }
}

module attributes {stable_mosaic.version = 11 : i64} {
  func.func @maxpool3x3s2_kernel(%arg0: i32, %arg1: memref<1x1x8x1x8x64xbf16, #tpu.memory_space<vmem>>, %arg2: memref<1x1x8x1x8x64xbf16, #tpu.memory_space<vmem>>, %arg3: memref<1x1x8x1x8x64xbf16, #tpu.memory_space<vmem>>, %arg4: memref<1x1x8x1x8x64xbf16, #tpu.memory_space<vmem>>, %arg5: memref<1x8x8x64xf32, #tpu.memory_space<vmem>>) attributes {dimension_semantics = [#tpu.dimension_semantics<parallel>], iteration_bounds = array<i64: 2>, scalar_prefetch = 0 : i64, scratch_operands = 0 : i64, tpu.core_type = #tpu.core_type<tc>, window_params = [{transform_indices = @transform_0, window_bounds = array<i64: 1, 1, 8, 1, 8, 64>}, {transform_indices = @transform_1, window_bounds = array<i64: 1, 1, 8, 1, 8, 64>}, {transform_indices = @transform_2, window_bounds = array<i64: 1, 1, 8, 1, 8, 64>}, {transform_indices = @transform_3, window_bounds = array<i64: 1, 1, 8, 1, 8, 64>}, {transform_indices = @transform_4, window_bounds = array<i64: 1, 8, 8, 64>}]} {
    %c0 = arith.constant 0 : index
    %c0_0 = arith.constant 0 : index
    %c0_1 = arith.constant 0 : index
    %c0_2 = arith.constant 0 : index
    %c0_3 = arith.constant 0 : index
    %c0_4 = arith.constant 0 : index
    %0 = vector.load %arg1[%c0, %c0_0, %c0_1, %c0_2, %c0_3, %c0_4] : memref<1x1x8x1x8x64xbf16, #tpu.memory_space<vmem>>, vector<1x1x8x1x8x64xbf16>
    %1 = vector.shape_cast %0 : vector<1x1x8x1x8x64xbf16> to vector<8x8x64xbf16>
    %2 = arith.extf %1 : vector<8x8x64xbf16> to vector<8x8x64xf32>
    %c0_5 = arith.constant 0 : index
    %c0_6 = arith.constant 0 : index
    %c0_7 = arith.constant 0 : index
    %c0_8 = arith.constant 0 : index
    %c0_9 = arith.constant 0 : index
    %c0_10 = arith.constant 0 : index
    %3 = vector.load %arg2[%c0_5, %c0_6, %c0_7, %c0_8, %c0_9, %c0_10] : memref<1x1x8x1x8x64xbf16, #tpu.memory_space<vmem>>, vector<1x1x8x1x8x64xbf16>
    %4 = vector.shape_cast %3 : vector<1x1x8x1x8x64xbf16> to vector<8x8x64xbf16>
    %5 = arith.extf %4 : vector<8x8x64xbf16> to vector<8x8x64xf32>
    %c0_11 = arith.constant 0 : index
    %c0_12 = arith.constant 0 : index
    %c0_13 = arith.constant 0 : index
    %c0_14 = arith.constant 0 : index
    %c0_15 = arith.constant 0 : index
    %c0_16 = arith.constant 0 : index
    %6 = vector.load %arg3[%c0_11, %c0_12, %c0_13, %c0_14, %c0_15, %c0_16] : memref<1x1x8x1x8x64xbf16, #tpu.memory_space<vmem>>, vector<1x1x8x1x8x64xbf16>
    %7 = vector.shape_cast %6 : vector<1x1x8x1x8x64xbf16> to vector<8x8x64xbf16>
    %8 = arith.extf %7 : vector<8x8x64xbf16> to vector<8x8x64xf32>
    %c0_17 = arith.constant 0 : index
    %c0_18 = arith.constant 0 : index
    %c0_19 = arith.constant 0 : index
    %c0_20 = arith.constant 0 : index
    %c0_21 = arith.constant 0 : index
    %c0_22 = arith.constant 0 : index
    %9 = vector.load %arg4[%c0_17, %c0_18, %c0_19, %c0_20, %c0_21, %c0_22] : memref<1x1x8x1x8x64xbf16, #tpu.memory_space<vmem>>, vector<1x1x8x1x8x64xbf16>
    %10 = vector.shape_cast %9 : vector<1x1x8x1x8x64xbf16> to vector<8x8x64xbf16>
    %11 = arith.extf %10 : vector<8x8x64xbf16> to vector<8x8x64xf32>
    %cst = arith.constant 0xFF800000 : f32
    %12 = vector.broadcast %cst : f32 to vector<8x1x64xf32>
    %13 = vector.extract_strided_slice %5 {offsets = [0, 0, 0], sizes = [8, 7, 64], strides = [1, 1, 1]} : vector<8x8x64xf32> to vector<8x7x64xf32>
    %14 = tpu.concatenate %12, %13 in 1 : vector<8x1x64xf32>, vector<8x7x64xf32> -> vector<8x8x64xf32>
    %15 = vector.extract_strided_slice %11 {offsets = [0, 0, 0], sizes = [8, 7, 64], strides = [1, 1, 1]} : vector<8x8x64xf32> to vector<8x7x64xf32>
    %16 = tpu.concatenate %12, %15 in 1 : vector<8x1x64xf32>, vector<8x7x64xf32> -> vector<8x8x64xf32>
    %17 = arith.maximumf %2, %5 : vector<8x8x64xf32>
    %18 = arith.maximumf %17, %14 : vector<8x8x64xf32>
    %19 = arith.maximumf %8, %11 : vector<8x8x64xf32>
    %20 = arith.maximumf %19, %16 : vector<8x8x64xf32>
    %cst_23 = arith.constant 0xFF800000 : f32
    %21 = vector.broadcast %cst_23 : f32 to vector<1x8x64xf32>
    %22 = vector.extract_strided_slice %20 {offsets = [0, 0, 0], sizes = [7, 8, 64], strides = [1, 1, 1]} : vector<8x8x64xf32> to vector<7x8x64xf32>
    %23 = tpu.concatenate %21, %22 in 0 : vector<1x8x64xf32>, vector<7x8x64xf32> -> vector<8x8x64xf32>
    %24 = arith.maximumf %18, %20 : vector<8x8x64xf32>
    %25 = arith.maximumf %24, %23 : vector<8x8x64xf32>
    %c0_24 = arith.constant 0 : index
    %c0_25 = arith.constant 0 : index
    %c0_26 = arith.constant 0 : index
    %c0_27 = arith.constant 0 : index
    %26 = vector.load %arg5[%c0_24, %c0_25, %c0_26, %c0_27] : memref<1x8x8x64xf32, #tpu.memory_space<vmem>>, vector<1x8x8x64xf32>
    %27 = vector.shape_cast %26 : vector<1x8x8x64xf32> to vector<8x8x64xf32>
    %28 = vector.shape_cast %25 : vector<8x8x64xf32> to vector<1x8x8x64xf32>
    tpu.vector_store %arg5[%c0_24, %c0_25, %c0_26, %c0_27], %28 {strides = array<i32>} : memref<1x8x8x64xf32, #tpu.memory_space<vmem>>, vector<1x8x8x64xf32>,
    return
  }
  func.func @transform_0(%arg0: i32) -> (i32, i32, i32, i32, i32, i32) {
    %c0_i32 = arith.constant 0 : i32
    %c0_i32_0 = arith.constant 0 : i32
    %c0_i32_1 = arith.constant 0 : i32
    %c0_i32_2 = arith.constant 0 : i32
    %c0_i32_3 = arith.constant 0 : i32
    %c0_i32_4 = arith.constant 0 : i32
    return %arg0, %c0_i32, %c0_i32_0, %c0_i32_1, %c0_i32_2, %c0_i32_3 : i32, i32, i32, i32, i32, i32
  }
  func.func @transform_1(%arg0: i32) -> (i32, i32, i32, i32, i32, i32) {
    %c0_i32 = arith.constant 0 : i32
    %c0_i32_0 = arith.constant 0 : i32
    %c1_i32 = arith.constant 1 : i32
    %c0_i32_1 = arith.constant 0 : i32
    %c0_i32_2 = arith.constant 0 : i32
    %c0_i32_3 = arith.constant 0 : i32
    return %arg0, %c0_i32, %c0_i32_0, %c1_i32, %c0_i32_1, %c0_i32_2 : i32, i32, i32, i32, i32, i32
  }
  func.func @transform_2(%arg0: i32) -> (i32, i32, i32, i32, i32, i32) {
    %c1_i32 = arith.constant 1 : i32
    %c0_i32 = arith.constant 0 : i32
    %c0_i32_0 = arith.constant 0 : i32
    %c0_i32_1 = arith.constant 0 : i32
    %c0_i32_2 = arith.constant 0 : i32
    %c0_i32_3 = arith.constant 0 : i32
    return %arg0, %c1_i32, %c0_i32, %c0_i32_0, %c0_i32_1, %c0_i32_2 : i32, i32, i32, i32, i32, i32
  }
  func.func @transform_3(%arg0: i32) -> (i32, i32, i32, i32, i32, i32) {
    %c1_i32 = arith.constant 1 : i32
    %c0_i32 = arith.constant 0 : i32
    %c1_i32_0 = arith.constant 1 : i32
    %c0_i32_1 = arith.constant 0 : i32
    %c0_i32_2 = arith.constant 0 : i32
    %c0_i32_3 = arith.constant 0 : i32
    return %arg0, %c1_i32, %c0_i32, %c1_i32_0, %c0_i32_1, %c0_i32_2 : i32, i32, i32, i32, i32, i32
  }
  func.func @transform_4(%arg0: i32) -> (i32, i32, i32, i32) {
    %c0_i32 = arith.constant 0 : i32
    %c0_i32_0 = arith.constant 0 : i32
    %c0_i32_1 = arith.constant 0 : i32
    %c0_i32_2 = arith.constant 0 : i32
    return %arg0, %c0_i32, %c0_i32_0, %c0_i32_1 : i32, i32, i32, i32
  }
}

</mosaic_0001>

<llo_original>
// kernel: resnet152_shallow_forward.3
$region0: #{resnet152_shallow_forward.3}
  #allocation0 [shape = 'u32[]', space=smem, size = 0x4, offset = 0x4, fixed_abs, tag = 'smem constant byte address 0x4 - core index']
  #allocation1 [shape = 'u32[144,128]{1,0:T(1,128)}', space=vmem, size = 0x12000, scoped, tag = 'internal scratch']
  %s0 = inlined_call_operand.vmem [shape: bf16[2,2,8,2,8,64], index: 0, kind: input, shape index: {}, may-alias: {0,1,2,3}]
  %s1 = inlined_call_operand.vmem [shape: bf16[2,2,8,2,8,64], index: 1, kind: input, shape index: {}, may-alias: {0,1,2,3}]
  %s2 = inlined_call_operand.vmem [shape: bf16[2,2,8,2,8,64], index: 2, kind: input, shape index: {}, may-alias: {0,1,2,3}]
  %s3 = inlined_call_operand.vmem [shape: bf16[2,2,8,2,8,64], index: 3, kind: input, shape index: {}, may-alias: {0,1,2,3}]
  %s4 = inlined_call_operand.hbm [shape: f32[2,8,8,64], index: 4, kind: output, shape index: {}]
  %s5 = sld [smem:[#allocation0]]
  $region213: #{resnet152_shallow_forward.3} parent=0
    _
  %s7 = ssub.s32 1, %s5
  %s8 = scalar_select 0, %s7, %s5
  $region1: #{resnet152_shallow_forward.3} parent=0
    #allocation2 [shape = 'u8[32768]{0}', space=vmem, size = 0x8000, scoped, tag = 'input window, operand 0']
    #allocation3 [shape = 'u8[32768]{0}', space=vmem, size = 0x8000, scoped, tag = 'input window, operand 1']
    #allocation4 [shape = 'u8[32768]{0}', space=vmem, size = 0x8000, scoped, tag = 'input window, operand 2']
    #allocation5 [shape = 'u8[32768]{0}', space=vmem, size = 0x8000, scoped, tag = 'input window, operand 3']
    #allocation6 [shape = 'u8[65536]{0}', space=vmem, size = 0x10000, scoped, tag = 'output window, operand 0']
    #allocation7 [shape = 's32[2]{0}', space=sflag, size = 0x8, scoped, tag = 'scoped memory for resnet152_shallow_forward.3']
    %9 = vsyncpa [#allocation7], 0
    %s10 = scalar_lea.sflag [#allocation7], 1
    %11 = vsyncpa %s10, 0
    loop: start=0, step=1, limit=4
    $region2: #{resnet152_shallow_forward.3} parent=1 // loop_pre_header
      _
    $region3: #{resnet152_shallow_forward.3} parent=1 // loop_header
      %s13 = sphi 0, %s17
      %p14 = scmp.ge.s32.totalorder %s13, 4
      %s23 = sphi 0, %s25
      %s26 = sphi 0, %s23
      %s27 = sphi 0, %s26
      %s43 = sphi 0, %s27
      %s49 = sphi 0, %s51
      %s52 = sphi 0, %s49
      %s53 = sphi 0, %s52
      %s69 = sphi 0, %s53
      %s75 = sphi 0, %s77
      %s78 = sphi 0, %s75
      %s79 = sphi 0, %s78
      %s95 = sphi 0, %s79
      %s101 = sphi 0, %s103
      %s104 = sphi 0, %s101
      %s105 = sphi 0, %s104
      %s121 = sphi 0, %s105
      %s127 = sphi 0, %s129
      %s130 = sphi 0, %s127
      %s131 = sphi 0, %s130
      %s147 = sphi 0, %s131
    $region4: #{resnet152_shallow_forward.3} parent=1 // loop_header_branch
      %16 = sbr.rel (%p14) target = $region8
    $region5: #{resnet152_shallow_forward.3} parent=1 // loop_body
      %s18 = ssub.s32 %s13, 1
      %s19 = ssub.s32 %s13, 2
      %s20 = sadd.s32 %s13, 1
      %s21 = ssub.s32 %s13, %s20
      %p22 = scmp.eq.s32.totalorder %s21, 0
      %s24 = sadd.s32 %s23, 1
      %s25 = scalar_select %p22, %s23, %s24
      %p28 = pneg %p22
      %p29 = scmp.eq.s32.totalorder %s13, 1
      %p30 = por %p28, %p29
      %p31 = scmp.ne.s32.totalorder %s23, %s26
      %p32 = scmp.eq.s32.totalorder %s13, 0
      %p33 = por %p31, %p32
      %p34 = scmp.ne.s32.totalorder %s23, %s26
      %p35 = scmp.eq.s32.totalorder %s18, 1
      %p36 = por %p34, %p35
      %p37 = scmp.ne.s32.totalorder %s26, %s27
      %p38 = scmp.eq.s32.totalorder %s18, 0
      %p39 = por %p37, %p38
      %p40 = scmp.ne.s32.totalorder %s26, %s27
      %p41 = scmp.eq.s32.totalorder %s19, 1
      %p42 = por %p40, %p41
      %p44 = scmp.ne.s32.totalorder %s27, %s43
      %p45 = scmp.eq.s32.totalorder %s19, 0
      %p46 = por %p44, %p45
      %s47 = ssub.s32 %s13, %s20
      %p48 = scmp.eq.s32.totalorder %s47, 0
      %s50 = sadd.s32 %s49, 1
      %s51 = scalar_select %p48, %s49, %s50
      %p54 = pneg %p48
      %p55 = scmp.eq.s32.totalorder %s13, 1
      %p56 = por %p54, %p55
      %p57 = scmp.ne.s32.totalorder %s49, %s52
      %p58 = scmp.eq.s32.totalorder %s13, 0
      %p59 = por %p57, %p58
      %p60 = scmp.ne.s32.totalorder %s49, %s52
      %p61 = scmp.eq.s32.totalorder %s18, 1
      %p62 = por %p60, %p61
      %p63 = scmp.ne.s32.totalorder %s52, %s53
      %p64 = scmp.eq.s32.totalorder %s18, 0
      %p65 = por %p63, %p64
      %p66 = scmp.ne.s32.totalorder %s52, %s53
      %p67 = scmp.eq.s32.totalorder %s19, 1
      %p68 = por %p66, %p67
      %p70 = scmp.ne.s32.totalorder %s53, %s69
      %p71 = scmp.eq.s32.totalorder %s19, 0
      %p72 = por %p70, %p71
      %s73 = ssub.s32 %s13, %s20
      %p74 = scmp.eq.s32.totalorder %s73, 0
      %s76 = sadd.s32 %s75, 1
      %s77 = scalar_select %p74, %s75, %s76
      %p80 = pneg %p74
      %p81 = scmp.eq.s32.totalorder %s13, 1
      %p82 = por %p80, %p81
      %p83 = scmp.ne.s32.totalorder %s75, %s78
      %p84 = scmp.eq.s32.totalorder %s13, 0
      %p85 = por %p83, %p84
      %p86 = scmp.ne.s32.totalorder %s75, %s78
      %p87 = scmp.eq.s32.totalorder %s18, 1
      %p88 = por %p86, %p87
      %p89 = scmp.ne.s32.totalorder %s78, %s79
      %p90 = scmp.eq.s32.totalorder %s18, 0
      %p91 = por %p89, %p90
      %p92 = scmp.ne.s32.totalorder %s78, %s79
      %p93 = scmp.eq.s32.totalorder %s19, 1
      %p94 = por %p92, %p93
      %p96 = scmp.ne.s32.totalorder %s79, %s95
      %p97 = scmp.eq.s32.totalorder %s19, 0
      %p98 = por %p96, %p97
      %s99 = ssub.s32 %s13, %s20
      %p100 = scmp.eq.s32.totalorder %s99, 0
      %s102 = sadd.s32 %s101, 1
      %s103 = scalar_select %p100, %s101, %s102
      %p106 = pneg %p100
      %p107 = scmp.eq.s32.totalorder %s13, 1
      %p108 = por %p106, %p107
      %p109 = scmp.ne.s32.totalorder %s101, %s104
      %p110 = scmp.eq.s32.totalorder %s13, 0
      %p111 = por %p109, %p110
      %p112 = scmp.ne.s32.totalorder %s101, %s104
      %p113 = scmp.eq.s32.totalorder %s18, 1
      %p114 = por %p112, %p113
      %p115 = scmp.ne.s32.totalorder %s104, %s105
      %p116 = scmp.eq.s32.totalorder %s18, 0
      %p117 = por %p115, %p116
      %p118 = scmp.ne.s32.totalorder %s104, %s105
      %p119 = scmp.eq.s32.totalorder %s19, 1
      %p120 = por %p118, %p119
      %p122 = scmp.ne.s32.totalorder %s105, %s121
      %p123 = scmp.eq.s32.totalorder %s19, 0
      %p124 = por %p122, %p123
      %s125 = ssub.s32 %s13, %s20
      %p126 = scmp.eq.s32.totalorder %s125, 0
      %s128 = sadd.s32 %s127, 1
      %s129 = scalar_select %p126, %s127, %s128
      %p132 = pneg %p126
      %p133 = scmp.eq.s32.totalorder %s13, 1
      %p134 = por %p132, %p133
      %p135 = scmp.ne.s32.totalorder %s127, %s130
      %p136 = scmp.eq.s32.totalorder %s13, 0
      %p137 = por %p135, %p136
      %p138 = scmp.ne.s32.totalorder %s127, %s130
      %p139 = scmp.eq.s32.totalorder %s18, 1
      %p140 = por %p138, %p139
      %p141 = scmp.ne.s32.totalorder %s130, %s131
      %p142 = scmp.eq.s32.totalorder %s18, 0
      %p143 = por %p141, %p142
      %p144 = scmp.ne.s32.totalorder %s130, %s131
      %p145 = scmp.eq.s32.totalorder %s19, 1
      %p146 = por %p144, %p145
      %p148 = scmp.ne.s32.totalorder %s131, %s147
      %p149 = scmp.eq.s32.totalorder %s19, 0
      %p150 = por %p148, %p149
      %p151 = scmp.le.s32.totalorder 1, %s13
      %p152 = scmp.lt.s32.totalorder %s13, 3
      %p153 = pnand %p151, %p152
      %p154 = pneg %p153
      // Predicated region
      $region9: #{resnet152_shallow_forward.3} parent=5 // pred_check
        _
      $region10: #{resnet152_shallow_forward.3} parent=5 // pred_check_branch
        %156 = sbr.rel (%p153) target = $region12
      $region11: #{resnet152_shallow_forward.3} parent=5 // pred_region
        %s157 = ssub.s32 %s13, 1
      $region12: #{resnet152_shallow_forward.3} parent=5 // pred_fallthru
        _
      %p158 = scmp.lt.s32.totalorder %s13, 2
      // Predicated region
      $region13: #{resnet152_shallow_forward.3} parent=5 // pred_check
        %p159 = pneg %p158
      $region14: #{resnet152_shallow_forward.3} parent=5 // pred_check_branch
        %161 = sbr.rel (%p159) target = $region16
      $region15: #{resnet152_shallow_forward.3} parent=5 // pred_region
        // Predicated region
        $region17: #{resnet152_shallow_forward.3} parent=15 // pred_check
          %p162 = pneg %p33
        $region18: #{resnet152_shallow_forward.3} parent=15 // pred_check_branch
          %164 = sbr.rel (%p162) target = $region20
        $region19: #{resnet152_shallow_forward.3} parent=15 // pred_region
          %s165 = sand.u32 %s23, 1
          %s166 = sand.u32 %s23, 1
          %s167 = smul.addr %s166, 32
          %s168 = scalar_lea.vmem [#allocation2], %s167
          %s169 = smul.addr %s13, 32
          %s170 = smul.addr %s169, 4
          %s171 = scalar_lea.vmem %s0, %s170
          // Predicated region
          $region21: #{resnet152_shallow_forward.3} parent=19 // pred_check
            _
          $region22: #{resnet152_shallow_forward.3} parent=19 // pred_check_branch
            %173 = sbr.rel (0) target = $region24
          $region23: #{resnet152_shallow_forward.3} parent=19 // pred_region
            // Predicated region
            $region25: #{resnet152_shallow_forward.3} parent=23 // pred_check
              _
            $region26: #{resnet152_shallow_forward.3} parent=23 // pred_check_branch
              %175 = sbr.rel target = $region28
            $region27: #{resnet152_shallow_forward.3} parent=23 // pred_region
              // Predicated region
              $region40: #{resnet152_shallow_forward.3} parent=27 // pred_check
                _
              $region41: #{resnet152_shallow_forward.3} parent=27 // pred_check_branch
                %205 = sbr.rel (0) target = $region43
              $region42: #{resnet152_shallow_forward.3} parent=27 // pred_region
                loop: start=0, step=1, limit=1
                $region44: #{resnet152_shallow_forward.3} parent=42 // loop_pre_header
                  _
                $region45: #{resnet152_shallow_forward.3} parent=42 // loop_header
                  %s207 = sphi 0, %s211
                  %p208 = scmp.ge.s32.totalorder %s207, 1
                  %s212 = sphi %s171, %s171
                  %s213 = sphi %s168, %s168
                $region46: #{resnet152_shallow_forward.3} parent=42 // loop_header_branch
                  %210 = sbr.rel (%p208) target = $region50
                $region47: #{resnet152_shallow_forward.3} parent=42 // loop_body
                  _
                $region48: #{resnet152_shallow_forward.3} parent=42 // loop_footer
                  %s211 = sadd.s32 1, %s207
                $region49: #{resnet152_shallow_forward.3} parent=42 // loop_footer_branch
                  %206 = sbr.rel target = $region45
                $region50: #{resnet152_shallow_forward.3} parent=42 // loop_exit
                  _
                %s215 = ssub.s32 16, 1
                loop: start=0, step=1, limit=1
                $region51: #{resnet152_shallow_forward.3} parent=42 // loop_pre_header
                  _
                $region52: #{resnet152_shallow_forward.3} parent=42 // loop_header
                  %s217 = sphi 0, %s221
                  %p218 = scmp.ge.s32.totalorder %s217, 1
                  %s222 = sphi %s171, %s171
                  %s223 = sphi %s168, %s168
                $region53: #{resnet152_shallow_forward.3} parent=42 // loop_header_branch
                  %220 = sbr.rel (%p218) target = $region57
                $region54: #{resnet152_shallow_forward.3} parent=42 // loop_body
                  %v224 = vld [vmem:[%s222] sm:%s215]
                  %225 = vst [vmem:[%s223] sm:%s215] %v224
                  %v226 = vld [vmem:[%s222 + $0x8] sm:%s215]
                  %227 = vst [vmem:[%s223 + $0x4] sm:%s215] %v226
                  %v228 = vld [vmem:[%s222 + $0x10] sm:%s215]
                  %229 = vst [vmem:[%s223 + $0x8] sm:%s215] %v228
                  %v230 = vld [vmem:[%s222 + $0x18] sm:%s215]
                  %231 = vst [vmem:[%s223 + $0xc] sm:%s215] %v230
                  %v232 = vld [vmem:[%s222 + $0x20] sm:%s215]
                  %233 = vst [vmem:[%s223 + $0x10] sm:%s215] %v232
                  %v234 = vld [vmem:[%s222 + $0x28] sm:%s215]
                  %235 = vst [vmem:[%s223 + $0x14] sm:%s215] %v234
                  %v236 = vld [vmem:[%s222 + $0x30] sm:%s215]
                  %237 = vst [vmem:[%s223 + $0x18] sm:%s215] %v236
                  %v238 = vld [vmem:[%s222 + $0x38] sm:%s215]
                  %239 = vst [vmem:[%s223 + $0x1c] sm:%s215] %v238
                $region55: #{resnet152_shallow_forward.3} parent=42 // loop_footer
                  %s221 = sadd.s32 1, %s217
                $region56: #{resnet152_shallow_forward.3} parent=42 // loop_footer_branch
                  %216 = sbr.rel target = $region52
                $region57: #{resnet152_shallow_forward.3} parent=42 // loop_exit
                  _
              $region43: #{resnet152_shallow_forward.3} parent=27 // pred_fallthru
                _
            $region28: #{resnet152_shallow_forward.3} parent=23 // pred_fallthru
              _
            // Predicated region
            $region29: #{resnet152_shallow_forward.3} parent=23 // pred_check
              _
            $region30: #{resnet152_shallow_forward.3} parent=23 // pred_check_branch
              %177 = sbr.rel (0) target = $region32
            $region31: #{resnet152_shallow_forward.3} parent=23 // pred_region
              %s179 = ssub.s32 16, 1
              loop: start=0, step=1, limit=1
              $region33: #{resnet152_shallow_forward.3} parent=31 // loop_pre_header
                _
              $region34: #{resnet152_shallow_forward.3} parent=31 // loop_header
                %s181 = sphi 0, %s185
                %p182 = scmp.ge.s32.totalorder %s181, 1
                %s186 = sphi %s171, %s171
                %s187 = sphi %s168, %s168
              $region35: #{resnet152_shallow_forward.3} parent=31 // loop_header_branch
                %184 = sbr.rel (%p182) target = $region39
              $region36: #{resnet152_shallow_forward.3} parent=31 // loop_body
                %v188 = vld [vmem:[%s186] sm:%s179]
                %189 = vst [vmem:[%s187] sm:%s179] %v188
                %v190 = vld [vmem:[%s186 + $0x8] sm:%s179]
                %191 = vst [vmem:[%s187 + $0x4] sm:%s179] %v190
                %v192 = vld [vmem:[%s186 + $0x10] sm:%s179]
                %193 = vst [vmem:[%s187 + $0x8] sm:%s179] %v192
                %v194 = vld [vmem:[%s186 + $0x18] sm:%s179]
                %195 = vst [vmem:[%s187 + $0xc] sm:%s179] %v194
                %v196 = vld [vmem:[%s186 + $0x20] sm:%s179]
                %197 = vst [vmem:[%s187 + $0x10] sm:%s179] %v196
                %v198 = vld [vmem:[%s186 + $0x28] sm:%s179]
                %199 = vst [vmem:[%s187 + $0x14] sm:%s179] %v198
                %v200 = vld [vmem:[%s186 + $0x30] sm:%s179]
                %201 = vst [vmem:[%s187 + $0x18] sm:%s179] %v200
                %v202 = vld [vmem:[%s186 + $0x38] sm:%s179]
                %203 = vst [vmem:[%s187 + $0x1c] sm:%s179] %v202
              $region37: #{resnet152_shallow_forward.3} parent=31 // loop_footer
                %s185 = sadd.s32 1, %s181
              $region38: #{resnet152_shallow_forward.3} parent=31 // loop_footer_branch
                %180 = sbr.rel target = $region34
              $region39: #{resnet152_shallow_forward.3} parent=31 // loop_exit
                _
            $region32: #{resnet152_shallow_forward.3} parent=23 // pred_fallthru
              _
          $region24: #{resnet152_shallow_forward.3} parent=19 // pred_fallthru
            _
          %240 = vnop
        $region20: #{resnet152_shallow_forward.3} parent=15 // pred_fallthru
          _
        // Predicated region
        $region58: #{resnet152_shallow_forward.3} parent=15 // pred_check
          %p241 = pneg %p59
        $region59: #{resnet152_shallow_forward.3} parent=15 // pred_check_branch
          %243 = sbr.rel (%p241) target = $region61
        $region60: #{resnet152_shallow_forward.3} parent=15 // pred_region
          %s244 = sand.u32 %s49, 1
          %s245 = sand.u32 %s49, 1
          %s246 = smul.addr %s245, 32
          %s247 = scalar_lea.vmem [#allocation3], %s246
          %s248 = smul.addr %s13, 32
          %s249 = sadd.s32 1, %s248
          %s250 = smul.addr %s249, 4
          %s251 = scalar_lea.vmem %s1, %s250
          // Predicated region
          $region62: #{resnet152_shallow_forward.3} parent=60 // pred_check
            _
          $region63: #{resnet152_shallow_forward.3} parent=60 // pred_check_branch
            %253 = sbr.rel (0) target = $region65
          $region64: #{resnet152_shallow_forward.3} parent=60 // pred_region
            // Predicated region
            $region66: #{resnet152_shallow_forward.3} parent=64 // pred_check
              _
            $region67: #{resnet152_shallow_forward.3} parent=64 // pred_check_branch
              %255 = sbr.rel target = $region69
            $region68: #{resnet152_shallow_forward.3} parent=64 // pred_region
              // Predicated region
              $region81: #{resnet152_shallow_forward.3} parent=68 // pred_check
                _
              $region82: #{resnet152_shallow_forward.3} parent=68 // pred_check_branch
                %285 = sbr.rel (0) target = $region84
              $region83: #{resnet152_shallow_forward.3} parent=68 // pred_region
                loop: start=0, step=1, limit=1
                $region85: #{resnet152_shallow_forward.3} parent=83 // loop_pre_header
                  _
                $region86: #{resnet152_shallow_forward.3} parent=83 // loop_header
                  %s287 = sphi 0, %s291
                  %p288 = scmp.ge.s32.totalorder %s287, 1
                  %s292 = sphi %s251, %s251
                  %s293 = sphi %s247, %s247
                $region87: #{resnet152_shallow_forward.3} parent=83 // loop_header_branch
                  %290 = sbr.rel (%p288) target = $region91
                $region88: #{resnet152_shallow_forward.3} parent=83 // loop_body
                  _
                $region89: #{resnet152_shallow_forward.3} parent=83 // loop_footer
                  %s291 = sadd.s32 1, %s287
                $region90: #{resnet152_shallow_forward.3} parent=83 // loop_footer_branch
                  %286 = sbr.rel target = $region86
                $region91: #{resnet152_shallow_forward.3} parent=83 // loop_exit
                  _
                %s295 = ssub.s32 16, 1
                loop: start=0, step=1, limit=1
                $region92: #{resnet152_shallow_forward.3} parent=83 // loop_pre_header
                  _
                $region93: #{resnet152_shallow_forward.3} parent=83 // loop_header
                  %s297 = sphi 0, %s301
                  %p298 = scmp.ge.s32.totalorder %s297, 1
                  %s302 = sphi %s251, %s251
                  %s303 = sphi %s247, %s247
                $region94: #{resnet152_shallow_forward.3} parent=83 // loop_header_branch
                  %300 = sbr.rel (%p298) target = $region98
                $region95: #{resnet152_shallow_forward.3} parent=83 // loop_body
                  %v304 = vld [vmem:[%s302] sm:%s295]
                  %305 = vst [vmem:[%s303] sm:%s295] %v304
                  %v306 = vld [vmem:[%s302 + $0x8] sm:%s295]
                  %307 = vst [vmem:[%s303 + $0x4] sm:%s295] %v306
                  %v308 = vld [vmem:[%s302 + $0x10] sm:%s295]
                  %309 = vst [vmem:[%s303 + $0x8] sm:%s295] %v308
                  %v310 = vld [vmem:[%s302 + $0x18] sm:%s295]
                  %311 = vst [vmem:[%s303 + $0xc] sm:%s295] %v310
                  %v312 = vld [vmem:[%s302 + $0x20] sm:%s295]
                  %313 = vst [vmem:[%s303 + $0x10] sm:%s295] %v312
                  %v314 = vld [vmem:[%s302 + $0x28] sm:%s295]
                  %315 = vst [vmem:[%s303 + $0x14] sm:%s295] %v314
                  %v316 = vld [vmem:[%s302 + $0x30] sm:%s295]
                  %317 = vst [vmem:[%s303 + $0x18] sm:%s295] %v316
                  %v318 = vld [vmem:[%s302 + $0x38] sm:%s295]
                  %319 = vst [vmem:[%s303 + $0x1c] sm:%s295] %v318
                $region96: #{resnet152_shallow_forward.3} parent=83 // loop_footer
                  %s301 = sadd.s32 1, %s297
                $region97: #{resnet152_shallow_forward.3} parent=83 // loop_footer_branch
                  %296 = sbr.rel target = $region93
                $region98: #{resnet152_shallow_forward.3} parent=83 // loop_exit
                  _
              $region84: #{resnet152_shallow_forward.3} parent=68 // pred_fallthru
                _
            $region69: #{resnet152_shallow_forward.3} parent=64 // pred_fallthru
              _
            // Predicated region
            $region70: #{resnet152_shallow_forward.3} parent=64 // pred_check
              _
            $region71: #{resnet152_shallow_forward.3} parent=64 // pred_check_branch
              %257 = sbr.rel (0) target = $region73
            $region72: #{resnet152_shallow_forward.3} parent=64 // pred_region
              %s259 = ssub.s32 16, 1
              loop: start=0, step=1, limit=1
              $region74: #{resnet152_shallow_forward.3} parent=72 // loop_pre_header
                _
              $region75: #{resnet152_shallow_forward.3} parent=72 // loop_header
                %s261 = sphi 0, %s265
                %p262 = scmp.ge.s32.totalorder %s261, 1
                %s266 = sphi %s251, %s251
                %s267 = sphi %s247, %s247
              $region76: #{resnet152_shallow_forward.3} parent=72 // loop_header_branch
                %264 = sbr.rel (%p262) target = $region80
              $region77: #{resnet152_shallow_forward.3} parent=72 // loop_body
                %v268 = vld [vmem:[%s266] sm:%s259]
                %269 = vst [vmem:[%s267] sm:%s259] %v268
                %v270 = vld [vmem:[%s266 + $0x8] sm:%s259]
                %271 = vst [vmem:[%s267 + $0x4] sm:%s259] %v270
                %v272 = vld [vmem:[%s266 + $0x10] sm:%s259]
                %273 = vst [vmem:[%s267 + $0x8] sm:%s259] %v272
                %v274 = vld [vmem:[%s266 + $0x18] sm:%s259]
                %275 = vst [vmem:[%s267 + $0xc] sm:%s259] %v274
                %v276 = vld [vmem:[%s266 + $0x20] sm:%s259]
                %277 = vst [vmem:[%s267 + $0x10] sm:%s259] %v276
                %v278 = vld [vmem:[%s266 + $0x28] sm:%s259]
                %279 = vst [vmem:[%s267 + $0x14] sm:%s259] %v278
                %v280 = vld [vmem:[%s266 + $0x30] sm:%s259]
                %281 = vst [vmem:[%s267 + $0x18] sm:%s259] %v280
                %v282 = vld [vmem:[%s266 + $0x38] sm:%s259]
                %283 = vst [vmem:[%s267 + $0x1c] sm:%s259] %v282
              $region78: #{resnet152_shallow_forward.3} parent=72 // loop_footer
                %s265 = sadd.s32 1, %s261
              $region79: #{resnet152_shallow_forward.3} parent=72 // loop_footer_branch
                %260 = sbr.rel target = $region75
              $region80: #{resnet152_shallow_forward.3} parent=72 // loop_exit
                _
            $region73: #{resnet152_shallow_forward.3} parent=64 // pred_fallthru
              _
          $region65: #{resnet152_shallow_forward.3} parent=60 // pred_fallthru
            _
          %320 = vnop
        $region61: #{resnet152_shallow_forward.3} parent=15 // pred_fallthru
          _
        // Predicated region
        $region99: #{resnet152_shallow_forward.3} parent=15 // pred_check
          %p321 = pneg %p85
        $region100: #{resnet152_shallow_forward.3} parent=15 // pred_check_branch
          %323 = sbr.rel (%p321) target = $region102
        $region101: #{resnet152_shallow_forward.3} parent=15 // pred_region
          %s324 = sand.u32 %s75, 1
          %s325 = sand.u32 %s75, 1
          %s326 = smul.addr %s325, 32
          %s327 = scalar_lea.vmem [#allocation4], %s326
          %s328 = smul.addr %s13, 32
          %s329 = sadd.s32 16, %s328
          %s330 = smul.addr %s329, 4
          %s331 = scalar_lea.vmem %s2, %s330
          // Predicated region
          $region103: #{resnet152_shallow_forward.3} parent=101 // pred_check
            _
          $region104: #{resnet152_shallow_forward.3} parent=101 // pred_check_branch
            %333 = sbr.rel (0) target = $region106
          $region105: #{resnet152_shallow_forward.3} parent=101 // pred_region
            // Predicated region
            $region107: #{resnet152_shallow_forward.3} parent=105 // pred_check
              _
            $region108: #{resnet152_shallow_forward.3} parent=105 // pred_check_branch
              %335 = sbr.rel target = $region110
            $region109: #{resnet152_shallow_forward.3} parent=105 // pred_region
              // Predicated region
              $region122: #{resnet152_shallow_forward.3} parent=109 // pred_check
                _
              $region123: #{resnet152_shallow_forward.3} parent=109 // pred_check_branch
                %365 = sbr.rel (0) target = $region125
              $region124: #{resnet152_shallow_forward.3} parent=109 // pred_region
                loop: start=0, step=1, limit=1
                $region126: #{resnet152_shallow_forward.3} parent=124 // loop_pre_header
                  _
                $region127: #{resnet152_shallow_forward.3} parent=124 // loop_header
                  %s367 = sphi 0, %s371
                  %p368 = scmp.ge.s32.totalorder %s367, 1
                  %s372 = sphi %s331, %s331
                  %s373 = sphi %s327, %s327
                $region128: #{resnet152_shallow_forward.3} parent=124 // loop_header_branch
                  %370 = sbr.rel (%p368) target = $region132
                $region129: #{resnet152_shallow_forward.3} parent=124 // loop_body
                  _
                $region130: #{resnet152_shallow_forward.3} parent=124 // loop_footer
                  %s371 = sadd.s32 1, %s367
                $region131: #{resnet152_shallow_forward.3} parent=124 // loop_footer_branch
                  %366 = sbr.rel target = $region127
                $region132: #{resnet152_shallow_forward.3} parent=124 // loop_exit
                  _
                %s375 = ssub.s32 16, 1
                loop: start=0, step=1, limit=1
                $region133: #{resnet152_shallow_forward.3} parent=124 // loop_pre_header
                  _
                $region134: #{resnet152_shallow_forward.3} parent=124 // loop_header
                  %s377 = sphi 0, %s381
                  %p378 = scmp.ge.s32.totalorder %s377, 1
                  %s382 = sphi %s331, %s331
                  %s383 = sphi %s327, %s327
                $region135: #{resnet152_shallow_forward.3} parent=124 // loop_header_branch
                  %380 = sbr.rel (%p378) target = $region139
                $region136: #{resnet152_shallow_forward.3} parent=124 // loop_body
                  %v384 = vld [vmem:[%s382] sm:%s375]
                  %385 = vst [vmem:[%s383] sm:%s375] %v384
                  %v386 = vld [vmem:[%s382 + $0x8] sm:%s375]
                  %387 = vst [vmem:[%s383 + $0x4] sm:%s375] %v386
                  %v388 = vld [vmem:[%s382 + $0x10] sm:%s375]
                  %389 = vst [vmem:[%s383 + $0x8] sm:%s375] %v388
                  %v390 = vld [vmem:[%s382 + $0x18] sm:%s375]
                  %391 = vst [vmem:[%s383 + $0xc] sm:%s375] %v390
                  %v392 = vld [vmem:[%s382 + $0x20] sm:%s375]
                  %393 = vst [vmem:[%s383 + $0x10] sm:%s375] %v392
                  %v394 = vld [vmem:[%s382 + $0x28] sm:%s375]
                  %395 = vst [vmem:[%s383 + $0x14] sm:%s375] %v394
                  %v396 = vld [vmem:[%s382 + $0x30] sm:%s375]
                  %397 = vst [vmem:[%s383 + $0x18] sm:%s375] %v396
                  %v398 = vld [vmem:[%s382 + $0x38] sm:%s375]
                  %399 = vst [vmem:[%s383 + $0x1c] sm:%s375] %v398
                $region137: #{resnet152_shallow_forward.3} parent=124 // loop_footer
                  %s381 = sadd.s32 1, %s377
                $region138: #{resnet152_shallow_forward.3} parent=124 // loop_footer_branch
                  %376 = sbr.rel target = $region134
                $region139: #{resnet152_shallow_forward.3} parent=124 // loop_exit
                  _
              $region125: #{resnet152_shallow_forward.3} parent=109 // pred_fallthru
                _
            $region110: #{resnet152_shallow_forward.3} parent=105 // pred_fallthru
              _
            // Predicated region
            $region111: #{resnet152_shallow_forward.3} parent=105 // pred_check
              _
            $region112: #{resnet152_shallow_forward.3} parent=105 // pred_check_branch
              %337 = sbr.rel (0) target = $region114
            $region113: #{resnet152_shallow_forward.3} parent=105 // pred_region
              %s339 = ssub.s32 16, 1
              loop: start=0, step=1, limit=1
              $region115: #{resnet152_shallow_forward.3} parent=113 // loop_pre_header
                _
              $region116: #{resnet152_shallow_forward.3} parent=113 // loop_header
                %s341 = sphi 0, %s345
                %p342 = scmp.ge.s32.totalorder %s341, 1
                %s346 = sphi %s331, %s331
                %s347 = sphi %s327, %s327
              $region117: #{resnet152_shallow_forward.3} parent=113 // loop_header_branch
                %344 = sbr.rel (%p342) target = $region121
              $region118: #{resnet152_shallow_forward.3} parent=113 // loop_body
                %v348 = vld [vmem:[%s346] sm:%s339]
                %349 = vst [vmem:[%s347] sm:%s339] %v348
                %v350 = vld [vmem:[%s346 + $0x8] sm:%s339]
                %351 = vst [vmem:[%s347 + $0x4] sm:%s339] %v350
                %v352 = vld [vmem:[%s346 + $0x10] sm:%s339]
                %353 = vst [vmem:[%s347 + $0x8] sm:%s339] %v352
                %v354 = vld [vmem:[%s346 + $0x18] sm:%s339]
                %355 = vst [vmem:[%s347 + $0xc] sm:%s339] %v354
                %v356 = vld [vmem:[%s346 + $0x20] sm:%s339]
                %357 = vst [vmem:[%s347 + $0x10] sm:%s339] %v356
                %v358 = vld [vmem:[%s346 + $0x28] sm:%s339]
                %359 = vst [vmem:[%s347 + $0x14] sm:%s339] %v358
                %v360 = vld [vmem:[%s346 + $0x30] sm:%s339]
                %361 = vst [vmem:[%s347 + $0x18] sm:%s339] %v360
                %v362 = vld [vmem:[%s346 + $0x38] sm:%s339]
                %363 = vst [vmem:[%s347 + $0x1c] sm:%s339] %v362
              $region119: #{resnet152_shallow_forward.3} parent=113 // loop_footer
                %s345 = sadd.s32 1, %s341
              $region120: #{resnet152_shallow_forward.3} parent=113 // loop_footer_branch
                %340 = sbr.rel target = $region116
              $region121: #{resnet152_shallow_forward.3} parent=113 // loop_exit
                _
            $region114: #{resnet152_shallow_forward.3} parent=105 // pred_fallthru
              _
          $region106: #{resnet152_shallow_forward.3} parent=101 // pred_fallthru
            _
          %400 = vnop
        $region102: #{resnet152_shallow_forward.3} parent=15 // pred_fallthru
          _
        // Predicated region
        $region140: #{resnet152_shallow_forward.3} parent=15 // pred_check
          %p401 = pneg %p111
        $region141: #{resnet152_shallow_forward.3} parent=15 // pred_check_branch
          %403 = sbr.rel (%p401) target = $region143
        $region142: #{resnet152_shallow_forward.3} parent=15 // pred_region
          %s404 = sand.u32 %s101, 1
          %s405 = sand.u32 %s101, 1
          %s406 = smul.addr %s405, 32
          %s407 = scalar_lea.vmem [#allocation5], %s406
          %s408 = smul.addr %s13, 32
          %s409 = sadd.s32 17, %s408
          %s410 = smul.addr %s409, 4
          %s411 = scalar_lea.vmem %s3, %s410
          // Predicated region
          $region144: #{resnet152_shallow_forward.3} parent=142 // pred_check
            _
          $region145: #{resnet152_shallow_forward.3} parent=142 // pred_check_branch
            %413 = sbr.rel (0) target = $region147
          $region146: #{resnet152_shallow_forward.3} parent=142 // pred_region
            // Predicated region
            $region148: #{resnet152_shallow_forward.3} parent=146 // pred_check
              _
            $region149: #{resnet152_shallow_forward.3} parent=146 // pred_check_branch
              %415 = sbr.rel target = $region151
            $region150: #{resnet152_shallow_forward.3} parent=146 // pred_region
              // Predicated region
              $region163: #{resnet152_shallow_forward.3} parent=150 // pred_check
                _
              $region164: #{resnet152_shallow_forward.3} parent=150 // pred_check_branch
                %445 = sbr.rel (0) target = $region166
              $region165: #{resnet152_shallow_forward.3} parent=150 // pred_region
                loop: start=0, step=1, limit=1
                $region167: #{resnet152_shallow_forward.3} parent=165 // loop_pre_header
                  _
                $region168: #{resnet152_shallow_forward.3} parent=165 // loop_header
                  %s447 = sphi 0, %s451
                  %p448 = scmp.ge.s32.totalorder %s447, 1
                  %s452 = sphi %s411, %s411
                  %s453 = sphi %s407, %s407
                $region169: #{resnet152_shallow_forward.3} parent=165 // loop_header_branch
                  %450 = sbr.rel (%p448) target = $region173
                $region170: #{resnet152_shallow_forward.3} parent=165 // loop_body
                  _
                $region171: #{resnet152_shallow_forward.3} parent=165 // loop_footer
                  %s451 = sadd.s32 1, %s447
                $region172: #{resnet152_shallow_forward.3} parent=165 // loop_footer_branch
                  %446 = sbr.rel target = $region168
                $region173: #{resnet152_shallow_forward.3} parent=165 // loop_exit
                  _
                %s455 = ssub.s32 16, 1
                loop: start=0, step=1, limit=1
                $region174: #{resnet152_shallow_forward.3} parent=165 // loop_pre_header
                  _
                $region175: #{resnet152_shallow_forward.3} parent=165 // loop_header
                  %s457 = sphi 0, %s461
                  %p458 = scmp.ge.s32.totalorder %s457, 1
                  %s462 = sphi %s411, %s411
                  %s463 = sphi %s407, %s407
                $region176: #{resnet152_shallow_forward.3} parent=165 // loop_header_branch
                  %460 = sbr.rel (%p458) target = $region180
                $region177: #{resnet152_shallow_forward.3} parent=165 // loop_body
                  %v464 = vld [vmem:[%s462] sm:%s455]
                  %465 = vst [vmem:[%s463] sm:%s455] %v464
                  %v466 = vld [vmem:[%s462 + $0x8] sm:%s455]
                  %467 = vst [vmem:[%s463 + $0x4] sm:%s455] %v466
                  %v468 = vld [vmem:[%s462 + $0x10] sm:%s455]
                  %469 = vst [vmem:[%s463 + $0x8] sm:%s455] %v468
                  %v470 = vld [vmem:[%s462 + $0x18] sm:%s455]
                  %471 = vst [vmem:[%s463 + $0xc] sm:%s455] %v470
                  %v472 = vld [vmem:[%s462 + $0x20] sm:%s455]
                  %473 = vst [vmem:[%s463 + $0x10] sm:%s455] %v472
                  %v474 = vld [vmem:[%s462 + $0x28] sm:%s455]
                  %475 = vst [vmem:[%s463 + $0x14] sm:%s455] %v474
                  %v476 = vld [vmem:[%s462 + $0x30] sm:%s455]
                  %477 = vst [vmem:[%s463 + $0x18] sm:%s455] %v476
                  %v478 = vld [vmem:[%s462 + $0x38] sm:%s455]
                  %479 = vst [vmem:[%s463 + $0x1c] sm:%s455] %v478
                $region178: #{resnet152_shallow_forward.3} parent=165 // loop_footer
                  %s461 = sadd.s32 1, %s457
                $region179: #{resnet152_shallow_forward.3} parent=165 // loop_footer_branch
                  %456 = sbr.rel target = $region175
                $region180: #{resnet152_shallow_forward.3} parent=165 // loop_exit
                  _
              $region166: #{resnet152_shallow_forward.3} parent=150 // pred_fallthru
                _
            $region151: #{resnet152_shallow_forward.3} parent=146 // pred_fallthru
              _
            // Predicated region
            $region152: #{resnet152_shallow_forward.3} parent=146 // pred_check
              _
            $region153: #{resnet152_shallow_forward.3} parent=146 // pred_check_branch
              %417 = sbr.rel (0) target = $region155
            $region154: #{resnet152_shallow_forward.3} parent=146 // pred_region
              %s419 = ssub.s32 16, 1
              loop: start=0, step=1, limit=1
              $region156: #{resnet152_shallow_forward.3} parent=154 // loop_pre_header
                _
              $region157: #{resnet152_shallow_forward.3} parent=154 // loop_header
                %s421 = sphi 0, %s425
                %p422 = scmp.ge.s32.totalorder %s421, 1
                %s426 = sphi %s411, %s411
                %s427 = sphi %s407, %s407
              $region158: #{resnet152_shallow_forward.3} parent=154 // loop_header_branch
                %424 = sbr.rel (%p422) target = $region162
              $region159: #{resnet152_shallow_forward.3} parent=154 // loop_body
                %v428 = vld [vmem:[%s426] sm:%s419]
                %429 = vst [vmem:[%s427] sm:%s419] %v428
                %v430 = vld [vmem:[%s426 + $0x8] sm:%s419]
                %431 = vst [vmem:[%s427 + $0x4] sm:%s419] %v430
                %v432 = vld [vmem:[%s426 + $0x10] sm:%s419]
                %433 = vst [vmem:[%s427 + $0x8] sm:%s419] %v432
                %v434 = vld [vmem:[%s426 + $0x18] sm:%s419]
                %435 = vst [vmem:[%s427 + $0xc] sm:%s419] %v434
                %v436 = vld [vmem:[%s426 + $0x20] sm:%s419]
                %437 = vst [vmem:[%s427 + $0x10] sm:%s419] %v436
                %v438 = vld [vmem:[%s426 + $0x28] sm:%s419]
                %439 = vst [vmem:[%s427 + $0x14] sm:%s419] %v438
                %v440 = vld [vmem:[%s426 + $0x30] sm:%s419]
                %441 = vst [vmem:[%s427 + $0x18] sm:%s419] %v440
                %v442 = vld [vmem:[%s426 + $0x38] sm:%s419]
                %443 = vst [vmem:[%s427 + $0x1c] sm:%s419] %v442
              $region160: #{resnet152_shallow_forward.3} parent=154 // loop_footer
                %s425 = sadd.s32 1, %s421
              $region161: #{resnet152_shallow_forward.3} parent=154 // loop_footer_branch
                %420 = sbr.rel target = $region157
              $region162: #{resnet152_shallow_forward.3} parent=154 // loop_exit
                _
            $region155: #{resnet152_shallow_forward.3} parent=146 // pred_fallthru
              _
          $region147: #{resnet152_shallow_forward.3} parent=142 // pred_fallthru
            _
          %480 = vnop
        $region143: #{resnet152_shallow_forward.3} parent=15 // pred_fallthru
          _
      $region16: #{resnet152_shallow_forward.3} parent=5 // pred_fallthru
        _
      %p481 = scmp.le.s32.totalorder 1, %s13
      %p482 = scmp.lt.s32.totalorder %s13, 3
      %p483 = pnand %p481, %p482
      %p484 = pneg %p483
      // Predicated region
      $region181: #{resnet152_shallow_forward.3} parent=5 // pred_check
        _
      $region182: #{resnet152_shallow_forward.3} parent=5 // pred_check_branch
        %486 = sbr.rel (%p483) target = $region184
      $region183: #{resnet152_shallow_forward.3} parent=5 // pred_region
        %s487 = ssub.s32 %s13, 1
        %s488 = sand.u32 %s26, 1
        %s489 = sand.u32 %s26, 1
        %s490 = smul.addr %s489, 32
        %s491 = scalar_lea.vmem [#allocation2], %s490
        // Predicated region
        $region185: #{resnet152_shallow_forward.3} parent=183 // pred_check
          %p492 = pneg %p39
        $region186: #{resnet152_shallow_forward.3} parent=183 // pred_check_branch
          %494 = sbr.rel (%p492) target = $region188
        $region187: #{resnet152_shallow_forward.3} parent=183 // pred_region
          _
        $region188: #{resnet152_shallow_forward.3} parent=183 // pred_fallthru
          _
        %s495 = sand.u32 %s52, 1
        %s496 = sand.u32 %s52, 1
        %s497 = smul.addr %s496, 32
        %s498 = scalar_lea.vmem [#allocation3], %s497
        // Predicated region
        $region189: #{resnet152_shallow_forward.3} parent=183 // pred_check
          %p499 = pneg %p65
        $region190: #{resnet152_shallow_forward.3} parent=183 // pred_check_branch
          %501 = sbr.rel (%p499) target = $region192
        $region191: #{resnet152_shallow_forward.3} parent=183 // pred_region
          _
        $region192: #{resnet152_shallow_forward.3} parent=183 // pred_fallthru
          _
        %s502 = sand.u32 %s78, 1
        %s503 = sand.u32 %s78, 1
        %s504 = smul.addr %s503, 32
        %s505 = scalar_lea.vmem [#allocation4], %s504
        // Predicated region
        $region193: #{resnet152_shallow_forward.3} parent=183 // pred_check
          %p506 = pneg %p91
        $region194: #{resnet152_shallow_forward.3} parent=183 // pred_check_branch
          %508 = sbr.rel (%p506) target = $region196
        $region195: #{resnet152_shallow_forward.3} parent=183 // pred_region
          _
        $region196: #{resnet152_shallow_forward.3} parent=183 // pred_fallthru
          _
        %s509 = sand.u32 %s104, 1
        %s510 = sand.u32 %s104, 1
        %s511 = smul.addr %s510, 32
        %s512 = scalar_lea.vmem [#allocation5], %s511
        // Predicated region
        $region197: #{resnet152_shallow_forward.3} parent=183 // pred_check
          %p513 = pneg %p117
        $region198: #{resnet152_shallow_forward.3} parent=183 // pred_check_branch
          %515 = sbr.rel (%p513) target = $region200
        $region199: #{resnet152_shallow_forward.3} parent=183 // pred_region
          _
        $region200: #{resnet152_shallow_forward.3} parent=183 // pred_fallthru
          _
        %s516 = sand.u32 %s26, 1
        %s517 = sand.u32 %s26, 1
        %s518 = smul.addr %s517, 32
        %s519 = scalar_lea.vmem [#allocation2], %s518
        %p520 = pneg %p39
        %p521 = pneg %p36
        %s522 = sand.u32 %s52, 1
        %s523 = sand.u32 %s52, 1
        %s524 = smul.addr %s523, 32
        %s525 = scalar_lea.vmem [#allocation3], %s524
        %p526 = pneg %p65
        %p527 = pneg %p62
        %s528 = sand.u32 %s78, 1
        %s529 = sand.u32 %s78, 1
        %s530 = smul.addr %s529, 32
        %s531 = scalar_lea.vmem [#allocation4], %s530
        %p532 = pneg %p91
        %p533 = pneg %p88
        %s534 = sand.u32 %s104, 1
        %s535 = sand.u32 %s104, 1
        %s536 = smul.addr %s535, 32
        %s537 = scalar_lea.vmem [#allocation5], %s536
        %p538 = pneg %p117
        %p539 = pneg %p114
        %p540 = pneg %p143
        %p541 = pneg %p140
        %s542 = sand.u32 %s130, 1
        %s543 = scalar_lea.sflag [#allocation7], %s542
        %s544 = sand.u32 %s130, 1
        %s545 = smul.addr %s544, 64
        %s546 = scalar_lea.vmem [#allocation6], %s545
        %v547 = vld [vmem:[%s491] sm:$0xf]
        %v548 = vld [vmem:[%s491 + $0x4] sm:$0xf]
        %v549 = vld [vmem:[%s491 + $0x8] sm:$0xf]
        %v550 = vld [vmem:[%s491 + $0xc] sm:$0xf]
        %v551 = vld [vmem:[%s491 + $0x10] sm:$0xf]
        %v552 = vld [vmem:[%s491 + $0x14] sm:$0xf]
        %v553 = vld [vmem:[%s491 + $0x18] sm:$0xf]
        %v554 = vld [vmem:[%s491 + $0x1c] sm:$0xf]
        %v555 = vunpack.c.l.bf16 %v547
        %v556 = vunpack.c.l.bf16 %v548
        %v557 = vunpack.c.l.bf16 %v549
        %v558 = vunpack.c.l.bf16 %v550
        %v559 = vunpack.c.l.bf16 %v551
        %v560 = vunpack.c.l.bf16 %v552
        %v561 = vunpack.c.l.bf16 %v553
        %v562 = vunpack.c.l.bf16 %v554
        %v563 = vld [vmem:[%s498] sm:$0xf]
        %v564 = vld [vmem:[%s498 + $0x4] sm:$0xf]
        %v565 = vld [vmem:[%s498 + $0x8] sm:$0xf]
        %v566 = vld [vmem:[%s498 + $0xc] sm:$0xf]
        %v567 = vld [vmem:[%s498 + $0x10] sm:$0xf]
        %v568 = vld [vmem:[%s498 + $0x14] sm:$0xf]
        %v569 = vld [vmem:[%s498 + $0x18] sm:$0xf]
        %v570 = vld [vmem:[%s498 + $0x1c] sm:$0xf]
        %v571 = vunpack.c.l.bf16 %v563
        %v572 = vunpack.c.l.bf16 %v564
        %v573 = vunpack.c.l.bf16 %v565
        %v574 = vunpack.c.l.bf16 %v566
        %v575 = vunpack.c.l.bf16 %v567
        %v576 = vunpack.c.l.bf16 %v568
        %v577 = vunpack.c.l.bf16 %v569
        %v578 = vunpack.c.l.bf16 %v570
        %v579 = vld [vmem:[%s505] sm:$0xf]
        %v580 = vld [vmem:[%s505 + $0x4] sm:$0xf]
        %v581 = vld [vmem:[%s505 + $0x8] sm:$0xf]
        %v582 = vld [vmem:[%s505 + $0xc] sm:$0xf]
        %v583 = vld [vmem:[%s505 + $0x10] sm:$0xf]
        %v584 = vld [vmem:[%s505 + $0x14] sm:$0xf]
        %v585 = vld [vmem:[%s505 + $0x18] sm:$0xf]
        %v586 = vld [vmem:[%s505 + $0x1c] sm:$0xf]
        %v587 = vunpack.c.l.bf16 %v579
        %v588 = vunpack.c.l.bf16 %v580
        %v589 = vunpack.c.l.bf16 %v581
        %v590 = vunpack.c.l.bf16 %v582
        %v591 = vunpack.c.l.bf16 %v583
        %v592 = vunpack.c.l.bf16 %v584
        %v593 = vunpack.c.l.bf16 %v585
        %v594 = vunpack.c.l.bf16 %v586
        %v595 = vld [vmem:[%s512] sm:$0xf]
        %v596 = vld [vmem:[%s512 + $0x4] sm:$0xf]
        %v597 = vld [vmem:[%s512 + $0x8] sm:$0xf]
        %v598 = vld [vmem:[%s512 + $0xc] sm:$0xf]
        %v599 = vld [vmem:[%s512 + $0x10] sm:$0xf]
        %v600 = vld [vmem:[%s512 + $0x14] sm:$0xf]
        %v601 = vld [vmem:[%s512 + $0x18] sm:$0xf]
        %v602 = vld [vmem:[%s512 + $0x1c] sm:$0xf]
        %v603 = vunpack.c.l.bf16 %v595
        %v604 = vunpack.c.l.bf16 %v596
        %v605 = vunpack.c.l.bf16 %v597
        %v606 = vunpack.c.l.bf16 %v598
        %v607 = vunpack.c.l.bf16 %v599
        %v608 = vunpack.c.l.bf16 %v600
        %v609 = vunpack.c.l.bf16 %v601
        %v610 = vunpack.c.l.bf16 %v602
        %v619 = vrot.slane %v571, 7
        %v620 = vrot.slane %v572, 7
        %v621 = vrot.slane %v573, 7
        %v622 = vrot.slane %v574, 7
        %v623 = vrot.slane %v575, 7
        %v624 = vrot.slane %v576, 7
        %v625 = vrot.slane %v577, 7
        %v626 = vrot.slane %v578, 7
        %vm635 = vcmask 1040384
        %v636 = vsel %vm635, -inf, %v619
        %v637 = vsel %vm635, -inf, %v620
        %v638 = vsel %vm635, -inf, %v621
        %v639 = vsel %vm635, -inf, %v622
        %v640 = vsel %vm635, -inf, %v623
        %v641 = vsel %vm635, -inf, %v624
        %v642 = vsel %vm635, -inf, %v625
        %v643 = vsel %vm635, -inf, %v626
        %v652 = vrot.slane %v603, 7
        %v653 = vrot.slane %v604, 7
        %v654 = vrot.slane %v605, 7
        %v655 = vrot.slane %v606, 7
        %v656 = vrot.slane %v607, 7
        %v657 = vrot.slane %v608, 7
        %v658 = vrot.slane %v609, 7
        %v659 = vrot.slane %v610, 7
        %v668 = vsel %vm635, -inf, %v652
        %v669 = vsel %vm635, -inf, %v653
        %v670 = vsel %vm635, -inf, %v654
        %v671 = vsel %vm635, -inf, %v655
        %v672 = vsel %vm635, -inf, %v656
        %v673 = vsel %vm635, -inf, %v657
        %v674 = vsel %vm635, -inf, %v658
        %v675 = vsel %vm635, -inf, %v659
        %v676 = vmax.f32 %v555, %v571
        %v677 = vmax.f32 %v556, %v572
        %v678 = vmax.f32 %v557, %v573
        %v679 = vmax.f32 %v558, %v574
        %v680 = vmax.f32 %v559, %v575
        %v681 = vmax.f32 %v560, %v576
        %v682 = vmax.f32 %v561, %v577
        %v683 = vmax.f32 %v562, %v578
        %v684 = vmax.f32 %v676, %v636
        %v685 = vmax.f32 %v677, %v637
        %v686 = vmax.f32 %v678, %v638
        %v687 = vmax.f32 %v679, %v639
        %v688 = vmax.f32 %v680, %v640
        %v689 = vmax.f32 %v681, %v641
        %v690 = vmax.f32 %v682, %v642
        %v691 = vmax.f32 %v683, %v643
        %v692 = vmax.f32 %v587, %v603
        %v693 = vmax.f32 %v588, %v604
        %v694 = vmax.f32 %v589, %v605
        %v695 = vmax.f32 %v590, %v606
        %v696 = vmax.f32 %v591, %v607
        %v697 = vmax.f32 %v592, %v608
        %v698 = vmax.f32 %v593, %v609
        %v699 = vmax.f32 %v594, %v610
        %v700 = vmax.f32 %v692, %v668
        %v701 = vmax.f32 %v693, %v669
        %v702 = vmax.f32 %v694, %v670
        %v703 = vmax.f32 %v695, %v671
        %v704 = vmax.f32 %v696, %v672
        %v705 = vmax.f32 %v697, %v673
        %v706 = vmax.f32 %v698, %v674
        %v707 = vmax.f32 %v699, %v675
        %v708 = vmax.f32 %v684, %v700
        %v709 = vmax.f32 %v685, %v701
        %v710 = vmax.f32 %v686, %v702
        %v711 = vmax.f32 %v687, %v703
        %v712 = vmax.f32 %v688, %v704
        %v713 = vmax.f32 %v689, %v705
        %v714 = vmax.f32 %v690, %v706
        %v715 = vmax.f32 %v691, %v707
        %v716 = vmax.f32 %v709, %v700
        %v717 = vmax.f32 %v710, %v701
        %v718 = vmax.f32 %v711, %v702
        %v719 = vmax.f32 %v712, %v703
        %v720 = vmax.f32 %v713, %v704
        %v721 = vmax.f32 %v714, %v705
        %v722 = vmax.f32 %v715, %v706
        %vm723 = vcmask 523264
        %724 = vst.msk [vmem:[%s546] sm:$0xff] %vm723, %v708
        %725 = vst.msk [vmem:[%s546 + $0x8] sm:$0xff] %vm723, %v716
        %726 = vst.msk [vmem:[%s546 + $0x10] sm:$0xff] %vm723, %v717
        %727 = vst.msk [vmem:[%s546 + $0x18] sm:$0xff] %vm723, %v718
        %728 = vst.msk [vmem:[%s546 + $0x20] sm:$0xff] %vm723, %v719
        %729 = vst.msk [vmem:[%s546 + $0x28] sm:$0xff] %vm723, %v720
        %730 = vst.msk [vmem:[%s546 + $0x30] sm:$0xff] %vm723, %v721
        %731 = vst.msk [vmem:[%s546 + $0x38] sm:$0xff] %vm723, %v722
        %s732 = sand.u32 %s130, 1
        %s733 = scalar_lea.sflag [#allocation7], %s732
        %s734 = sand.u32 %s130, 1
        %s735 = smul.addr %s734, 64
        %s736 = scalar_lea.vmem [#allocation6], %s735
        // Predicated region
        $region201: #{resnet152_shallow_forward.3} parent=183 // pred_check
          %p737 = pneg %p140
        $region202: #{resnet152_shallow_forward.3} parent=183 // pred_check_branch
          %739 = sbr.rel (%p737) target = $region204
        $region203: #{resnet152_shallow_forward.3} parent=183 // pred_region
          %s741 = ssub.s32 1024, 1024
          %742 = vsyncadd %s733, %s741
          %s743 = smul.addr %s18, 8
          %s744 = smul.addr %s743, 128
          %s745 = scalar_lea.hbm %s4, %s744
          %s746 = sshll.u32 %s736, 4
          %s747 = int_to_ptr.vmem [resolvable:$true] %s746
          %752 = dma.vmem_to_hbm [thread:$0]  %s747, 1024, %s745, %s733, 128, 128, 8
        $region204: #{resnet152_shallow_forward.3} parent=183 // pred_fallthru
          _
      $region184: #{resnet152_shallow_forward.3} parent=5 // pred_fallthru
        _
      %p753 = scmp.le.s32.totalorder 2, %s13
      // Predicated region
      $region205: #{resnet152_shallow_forward.3} parent=5 // pred_check
        %p754 = pneg %p753
      $region206: #{resnet152_shallow_forward.3} parent=5 // pred_check_branch
        %756 = sbr.rel (%p754) target = $region208
      $region207: #{resnet152_shallow_forward.3} parent=5 // pred_region
        %s757 = ssub.s32 %s13, 2
        // Predicated region
        $region209: #{resnet152_shallow_forward.3} parent=207 // pred_check
          %p758 = pneg %p146
        $region210: #{resnet152_shallow_forward.3} parent=207 // pred_check_branch
          %760 = sbr.rel (%p758) target = $region212
        $region211: #{resnet152_shallow_forward.3} parent=207 // pred_region
          %s761 = sand.u32 %s131, 1
          %s762 = scalar_lea.sflag [#allocation7], %s761
          %s763 = sand.u32 %s131, 1
          %s764 = smul.addr %s763, 64
          %s765 = scalar_lea.vmem [#allocation6], %s764
          %766 = dma.done %s762, 1024
        $region212: #{resnet152_shallow_forward.3} parent=207 // pred_fallthru
          _
      $region208: #{resnet152_shallow_forward.3} parent=5 // pred_fallthru
        _
    $region6: #{resnet152_shallow_forward.3} parent=1 // loop_footer
      %s17 = sadd.s32 1, %s13
    $region7: #{resnet152_shallow_forward.3} parent=1 // loop_footer_branch
      %12 = sbr.rel target = $region3
    $region8: #{resnet152_shallow_forward.3} parent=1 // loop_exit
      _
    %767 = vsyncpa [#allocation7], 1
    %s768 = scalar_lea.sflag [#allocation7], 1
    %769 = vsyncpa %s768, 1

// kernel: resnet152_shallow_forward.2
$region0: #{resnet152_shallow_forward.2}
  #allocation0 [shape = 'u32[]', space=smem, size = 0x4, offset = 0x4, fixed_abs, tag = 'smem constant byte address 0x4 - core index']
  #allocation1 [shape = 'u32[144,128]{1,0:T(1,128)}', space=vmem, size = 0x12000, scoped, tag = 'internal scratch']
  %s0 = inlined_call_operand.vmem [shape: bf16[512,147], index: 0, kind: input, shape index: {}]
  %s1 = inlined_call_operand.vmem [shape: bf16[147,64], index: 1, kind: input, shape index: {}]
  %s2 = inlined_call_operand.vmem [shape: f32[1,64], index: 2, kind: input, shape index: {}]
  %s3 = inlined_call_operand.vmem [shape: bf16[512,64], index: 3, kind: output, shape index: {}]
  %s4 = sld [smem:[#allocation0]]
  $region22: #{resnet152_shallow_forward.2} parent=0
    _
  %s6 = ssub.s32 1, %s4
  %s7 = scalar_select 0, %s6, %s4
  // Predicated region
  $region2: #{resnet152_shallow_forward.2} parent=0 // pred_check
    _
  $region3: #{resnet152_shallow_forward.2} parent=0 // pred_check_branch
    %9 = sbr.rel (0) target = $region5
  $region4: #{resnet152_shallow_forward.2} parent=0 // pred_region
    _
  $region5: #{resnet152_shallow_forward.2} parent=0 // pred_fallthru
    _
  // Predicated region
  $region6: #{resnet152_shallow_forward.2} parent=0 // pred_check
    _
  $region7: #{resnet152_shallow_forward.2} parent=0 // pred_check_branch
    %11 = sbr.rel (0) target = $region9
  $region8: #{resnet152_shallow_forward.2} parent=0 // pred_region
    _
  $region9: #{resnet152_shallow_forward.2} parent=0 // pred_fallthru
    _
  // Predicated region
  $region10: #{resnet152_shallow_forward.2} parent=0 // pred_check
    _
  $region11: #{resnet152_shallow_forward.2} parent=0 // pred_check_branch
    %13 = sbr.rel (0) target = $region13
  $region12: #{resnet152_shallow_forward.2} parent=0 // pred_region
    _
  $region13: #{resnet152_shallow_forward.2} parent=0 // pred_fallthru
    _
  %v15 = vld [vmem:[%s0] sm:$0xff]
  %v16 = vld [vmem:[%s0 + $0x8] sm:$0xff]
  %v17 = vld [vmem:[%s0 + $0x10] sm:$0xff]
  %v18 = vld [vmem:[%s0 + $0x18] sm:$0xff]
  %v19 = vld [vmem:[%s0 + $0x20] sm:$0xff]
  %v20 = vld [vmem:[%s0 + $0x28] sm:$0xff]
  %v21 = vld [vmem:[%s0 + $0x30] sm:$0xff]
  %v22 = vld [vmem:[%s0 + $0x38] sm:$0xff]
  %v23 = vld [vmem:[%s0 + $0x40] sm:$0xff]
  %v24 = vld [vmem:[%s0 + $0x48] sm:$0xff]
  %v25 = vld [vmem:[%s0 + $0x50] sm:$0xff]
  %v26 = vld [vmem:[%s0 + $0x58] sm:$0xff]
  %v27 = vld [vmem:[%s0 + $0x60] sm:$0xff]
  %v28 = vld [vmem:[%s0 + $0x68] sm:$0xff]
  %v29 = vld [vmem:[%s0 + $0x70] sm:$0xff]
  %v30 = vld [vmem:[%s0 + $0x78] sm:$0xff]
  %v31 = vld [vmem:[%s0 + $0x80] sm:$0xff]
  %v32 = vld [vmem:[%s0 + $0x88] sm:$0xff]
  %v33 = vld [vmem:[%s0 + $0x90] sm:$0xff]
  %v34 = vld [vmem:[%s0 + $0x98] sm:$0xff]
  %v35 = vld [vmem:[%s0 + $0xa0] sm:$0xff]
  %v36 = vld [vmem:[%s0 + $0xa8] sm:$0xff]
  %v37 = vld [vmem:[%s0 + $0xb0] sm:$0xff]
  %v38 = vld [vmem:[%s0 + $0xb8] sm:$0xff]
  %v39 = vld [vmem:[%s0 + $0xc0] sm:$0xff]
  %v40 = vld [vmem:[%s0 + $0xc8] sm:$0xff]
  %v41 = vld [vmem:[%s0 + $0xd0] sm:$0xff]
  %v42 = vld [vmem:[%s0 + $0xd8] sm:$0xff]
  %v43 = vld [vmem:[%s0 + $0xe0] sm:$0xff]
  %v44 = vld [vmem:[%s0 + $0xe8] sm:$0xff]
  %v45 = vld [vmem:[%s0 + $0xf0] sm:$0xff]
  %v46 = vld [vmem:[%s0 + $0xf8] sm:$0xff]
  %v47 = vld [vmem:[%s0 + $0x100] sm:$0xff]
  %v48 = vld [vmem:[%s0 + $0x108] sm:$0xff]
  %v49 = vld [vmem:[%s0 + $0x110] sm:$0xff]
  %v50 = vld [vmem:[%s0 + $0x118] sm:$0xff]
  %v51 = vld [vmem:[%s0 + $0x120] sm:$0xff]
  %v52 = vld [vmem:[%s0 + $0x128] sm:$0xff]
  %v53 = vld [vmem:[%s0 + $0x130] sm:$0xff]
  %v54 = vld [vmem:[%s0 + $0x138] sm:$0xff]
  %v55 = vld [vmem:[%s0 + $0x140] sm:$0xff]
  %v56 = vld [vmem:[%s0 + $0x148] sm:$0xff]
  %v57 = vld [vmem:[%s0 + $0x150] sm:$0xff]
  %v58 = vld [vmem:[%s0 + $0x158] sm:$0xff]
  %v59 = vld [vmem:[%s0 + $0x160] sm:$0xff]
  %v60 = vld [vmem:[%s0 + $0x168] sm:$0xff]
  %v61 = vld [vmem:[%s0 + $0x170] sm:$0xff]
  %v62 = vld [vmem:[%s0 + $0x178] sm:$0xff]
  %v63 = vld [vmem:[%s0 + $0x180] sm:$0xff]
  %v64 = vld [vmem:[%s0 + $0x188] sm:$0xff]
  %v65 = vld [vmem:[%s0 + $0x190] sm:$0xff]
  %v66 = vld [vmem:[%s0 + $0x198] sm:$0xff]
  %v67 = vld [vmem:[%s0 + $0x1a0] sm:$0xff]
  %v68 = vld [vmem:[%s0 + $0x1a8] sm:$0xff]
  %v69 = vld [vmem:[%s0 + $0x1b0] sm:$0xff]
  %v70 = vld [vmem:[%s0 + $0x1b8] sm:$0xff]
  %v71 = vld [vmem:[%s0 + $0x1c0] sm:$0xff]
  %v72 = vld [vmem:[%s0 + $0x1c8] sm:$0xff]
  %v73 = vld [vmem:[%s0 + $0x1d0] sm:$0xff]
  %v74 = vld [vmem:[%s0 + $0x1d8] sm:$0xff]
  %v75 = vld [vmem:[%s0 + $0x1e0] sm:$0xff]
  %v76 = vld [vmem:[%s0 + $0x1e8] sm:$0xff]
  %v77 = vld [vmem:[%s0 + $0x1f0] sm:$0xff]
  %v78 = vld [vmem:[%s0 + $0x1f8] sm:$0xff]
  %v79 = vld [vmem:[%s1] sm:$0xf]
  %v80 = vld [vmem:[%s1 + $0x4] sm:$0xf]
  %v81 = vld [vmem:[%s1 + $0x8] sm:$0xf]
  %v82 = vld [vmem:[%s1 + $0xc] sm:$0xf]
  %v83 = vld [vmem:[%s1 + $0x10] sm:$0xf]
  %v84 = vld [vmem:[%s1 + $0x14] sm:$0xf]
  %v85 = vld [vmem:[%s1 + $0x18] sm:$0xf]
  %v86 = vld [vmem:[%s1 + $0x1c] sm:$0xf]
  %v87 = vld [vmem:[%s1 + $0x20] sm:$0xf]
  %v88 = vld [vmem:[%s1 + $0x24] sm:$0xf]
  %v89 = vld [vmem:[%s1 + $0x28] sm:$0xf]
  %v90 = vld [vmem:[%s1 + $0x2c] sm:$0xf]
  %v91 = vld [vmem:[%s1 + $0x30] sm:$0xf]
  %v92 = vld [vmem:[%s1 + $0x34] sm:$0xf]
  %v93 = vld [vmem:[%s1 + $0x38] sm:$0xf]
  %v94 = vld [vmem:[%s1 + $0x3c] sm:$0xf]
  %v95 = vld [vmem:[%s1 + $0x40] sm:$0xf]
  %v96 = vld [vmem:[%s1 + $0x44] sm:$0xf]
  %v97 = vld [vmem:[%s1 + $0x48] sm:$0x3]
  %v98 = vld [vmem:[%s2] sm:$0x1]
  %v100 = vlaneseq
  %v101 = vshrl.u32 %v100, 7
  %v102 = vsub.s32 0, %v101
  %v103 = vrot.slane %v98, %v102
  %v169 = vunpack.c.l.b16 %v15
  %v170 = vunpack.c.h.b16 %v15
  %v171 = vunpack.c.l.b16 %v16
  %v172 = vunpack.c.h.b16 %v16
  %v173 = vunpack.c.l.b16 %v17
  %v174 = vunpack.c.h.b16 %v17
  %v175 = vunpack.c.l.b16 %v18
  %v176 = vunpack.c.h.b16 %v18
  %v177 = vunpack.c.l.b16 %v19
  %v178 = vunpack.c.h.b16 %v19
  %v179 = vunpack.c.l.b16 %v20
  %v180 = vunpack.c.h.b16 %v20
  %v181 = vunpack.c.l.b16 %v21
  %v182 = vunpack.c.h.b16 %v21
  %v183 = vunpack.c.l.b16 %v22
  %v184 = vunpack.c.h.b16 %v22
  %v185 = vunpack.c.l.b16 %v23
  %v186 = vunpack.c.h.b16 %v23
  %v187 = vunpack.c.l.b16 %v24
  %v188 = vunpack.c.h.b16 %v24
  %v189 = vunpack.c.l.b16 %v25
  %v190 = vunpack.c.h.b16 %v25
  %v191 = vunpack.c.l.b16 %v26
  %v192 = vunpack.c.h.b16 %v26
  %v193 = vunpack.c.l.b16 %v27
  %v194 = vunpack.c.h.b16 %v27
  %v195 = vunpack.c.l.b16 %v28
  %v196 = vunpack.c.h.b16 %v28
  %v197 = vunpack.c.l.b16 %v29
  %v198 = vunpack.c.h.b16 %v29
  %v199 = vunpack.c.l.b16 %v30
  %v200 = vunpack.c.h.b16 %v30
  %v201 = vunpack.c.l.b16 %v31
  %v202 = vunpack.c.h.b16 %v31
  %v203 = vunpack.c.l.b16 %v32
  %v204 = vunpack.c.h.b16 %v32
  %v205 = vunpack.c.l.b16 %v33
  %v206 = vunpack.c.h.b16 %v33
  %v207 = vunpack.c.l.b16 %v34
  %v208 = vunpack.c.h.b16 %v34
  %v209 = vunpack.c.l.b16 %v35
  %v210 = vunpack.c.h.b16 %v35
  %v211 = vunpack.c.l.b16 %v36
  %v212 = vunpack.c.h.b16 %v36
  %v213 = vunpack.c.l.b16 %v37
  %v214 = vunpack.c.h.b16 %v37
  %v215 = vunpack.c.l.b16 %v38
  %v216 = vunpack.c.h.b16 %v38
  %v217 = vunpack.c.l.b16 %v39
  %v218 = vunpack.c.h.b16 %v39
  %v219 = vunpack.c.l.b16 %v40
  %v220 = vunpack.c.h.b16 %v40
  %v221 = vunpack.c.l.b16 %v41
  %v222 = vunpack.c.h.b16 %v41
  %v223 = vunpack.c.l.b16 %v42
  %v224 = vunpack.c.h.b16 %v42
  %v225 = vunpack.c.l.b16 %v43
  %v226 = vunpack.c.h.b16 %v43
  %v227 = vunpack.c.l.b16 %v44
  %v228 = vunpack.c.h.b16 %v44
  %v229 = vunpack.c.l.b16 %v45
  %v230 = vunpack.c.h.b16 %v45
  %v231 = vunpack.c.l.b16 %v46
  %v232 = vunpack.c.h.b16 %v46
  %v233 = vunpack.c.l.b16 %v47
  %v234 = vunpack.c.h.b16 %v47
  %v235 = vunpack.c.l.b16 %v48
  %v236 = vunpack.c.h.b16 %v48
  %v237 = vunpack.c.l.b16 %v49
  %v238 = vunpack.c.h.b16 %v49
  %v239 = vunpack.c.l.b16 %v50
  %v240 = vunpack.c.h.b16 %v50
  %v241 = vunpack.c.l.b16 %v51
  %v242 = vunpack.c.h.b16 %v51
  %v243 = vunpack.c.l.b16 %v52
  %v244 = vunpack.c.h.b16 %v52
  %v245 = vunpack.c.l.b16 %v53
  %v246 = vunpack.c.h.b16 %v53
  %v247 = vunpack.c.l.b16 %v54
  %v248 = vunpack.c.h.b16 %v54
  %v249 = vunpack.c.l.b16 %v55
  %v250 = vunpack.c.h.b16 %v55
  %v251 = vunpack.c.l.b16 %v56
  %v252 = vunpack.c.h.b16 %v56
  %v253 = vunpack.c.l.b16 %v57
  %v254 = vunpack.c.h.b16 %v57
  %v255 = vunpack.c.l.b16 %v58
  %v256 = vunpack.c.h.b16 %v58
  %v257 = vunpack.c.l.b16 %v59
  %v258 = vunpack.c.h.b16 %v59
  %v259 = vunpack.c.l.b16 %v60
  %v260 = vunpack.c.h.b16 %v60
  %v261 = vunpack.c.l.b16 %v61
  %v262 = vunpack.c.h.b16 %v61
  %v263 = vunpack.c.l.b16 %v62
  %v264 = vunpack.c.h.b16 %v62
  %v265 = vunpack.c.l.b16 %v63
  %v266 = vunpack.c.h.b16 %v63
  %v267 = vunpack.c.l.b16 %v64
  %v268 = vunpack.c.h.b16 %v64
  %v269 = vunpack.c.l.b16 %v65
  %v270 = vunpack.c.h.b16 %v65
  %v271 = vunpack.c.l.b16 %v66
  %v272 = vunpack.c.h.b16 %v66
  %v273 = vunpack.c.l.b16 %v67
  %v274 = vunpack.c.h.b16 %v67
  %v275 = vunpack.c.l.b16 %v68
  %v276 = vunpack.c.h.b16 %v68
  %v277 = vunpack.c.l.b16 %v69
  %v278 = vunpack.c.h.b16 %v69
  %v279 = vunpack.c.l.b16 %v70
  %v280 = vunpack.c.h.b16 %v70
  %v281 = vunpack.c.l.b16 %v71
  %v282 = vunpack.c.h.b16 %v71
  %v283 = vunpack.c.l.b16 %v72
  %v284 = vunpack.c.h.b16 %v72
  %v285 = vunpack.c.l.b16 %v73
  %v286 = vunpack.c.h.b16 %v73
  %v287 = vunpack.c.l.b16 %v74
  %v288 = vunpack.c.h.b16 %v74
  %v289 = vunpack.c.l.b16 %v75
  %v290 = vunpack.c.h.b16 %v75
  %v291 = vunpack.c.l.b16 %v76
  %v292 = vunpack.c.h.b16 %v76
  %v293 = vunpack.c.l.b16 %v77
  %v294 = vunpack.c.h.b16 %v77
  %v295 = vunpack.c.l.b16 %v78
  %v296 = vunpack.c.h.b16 %v78
  %v297 = vpack.c.b16 %v171, %v169
  %v298 = vpack.c.b16 %v172, %v170
  %v299 = vpack.c.b16 %v175, %v173
  %v300 = vpack.c.b16 %v176, %v174
  %v301 = vpack.c.b16 %v179, %v177
  %v302 = vpack.c.b16 %v180, %v178
  %v303 = vpack.c.b16 %v183, %v181
  %v304 = vpack.c.b16 %v184, %v182
  %v305 = vpack.c.b16 %v187, %v185
  %v306 = vpack.c.b16 %v188, %v186
  %v307 = vpack.c.b16 %v191, %v189
  %v308 = vpack.c.b16 %v192, %v190
  %v309 = vpack.c.b16 %v195, %v193
  %v310 = vpack.c.b16 %v196, %v194
  %v311 = vpack.c.b16 %v199, %v197
  %v312 = vpack.c.b16 %v200, %v198
  %v313 = vpack.c.b16 %v203, %v201
  %v314 = vpack.c.b16 %v204, %v202
  %v315 = vpack.c.b16 %v207, %v205
  %v316 = vpack.c.b16 %v208, %v206
  %v317 = vpack.c.b16 %v211, %v209
  %v318 = vpack.c.b16 %v212, %v210
  %v319 = vpack.c.b16 %v215, %v213
  %v320 = vpack.c.b16 %v216, %v214
  %v321 = vpack.c.b16 %v219, %v217
  %v322 = vpack.c.b16 %v220, %v218
  %v323 = vpack.c.b16 %v223, %v221
  %v324 = vpack.c.b16 %v224, %v222
  %v325 = vpack.c.b16 %v227, %v225
  %v326 = vpack.c.b16 %v228, %v226
  %v327 = vpack.c.b16 %v231, %v229
  %v328 = vpack.c.b16 %v232, %v230
  %v329 = vpack.c.b16 %v235, %v233
  %v330 = vpack.c.b16 %v236, %v234
  %v331 = vpack.c.b16 %v239, %v237
  %v332 = vpack.c.b16 %v240, %v238
  %v333 = vpack.c.b16 %v243, %v241
  %v334 = vpack.c.b16 %v244, %v242
  %v335 = vpack.c.b16 %v247, %v245
  %v336 = vpack.c.b16 %v248, %v246
  %v337 = vpack.c.b16 %v251, %v249
  %v338 = vpack.c.b16 %v252, %v250
  %v339 = vpack.c.b16 %v255, %v253
  %v340 = vpack.c.b16 %v256, %v254
  %v341 = vpack.c.b16 %v259, %v257
  %v342 = vpack.c.b16 %v260, %v258
  %v343 = vpack.c.b16 %v263, %v261
  %v344 = vpack.c.b16 %v264, %v262
  %v345 = vpack.c.b16 %v267, %v265
  %v346 = vpack.c.b16 %v268, %v266
  %v347 = vpack.c.b16 %v271, %v269
  %v348 = vpack.c.b16 %v272, %v270
  %v349 = vpack.c.b16 %v275, %v273
  %v350 = vpack.c.b16 %v276, %v274
  %v351 = vpack.c.b16 %v279, %v277
  %v352 = vpack.c.b16 %v280, %v278
  %v353 = vpack.c.b16 %v283, %v281
  %v354 = vpack.c.b16 %v284, %v282
  %v355 = vpack.c.b16 %v287, %v285
  %v356 = vpack.c.b16 %v288, %v286
  %v357 = vpack.c.b16 %v291, %v289
  %v358 = vpack.c.b16 %v292, %v290
  %v359 = vpack.c.b16 %v295, %v293
  %v360 = vpack.c.b16 %v296, %v294
  %v412 = vunpack.c.l.b16 %v79
  %v413 = vunpack.c.l.b16 %v80
  %v414 = vunpack.c.l.b16 %v81
  %v415 = vunpack.c.l.b16 %v82
  %v416 = vunpack.c.l.b16 %v83
  %v417 = vunpack.c.l.b16 %v84
  %v418 = vunpack.c.l.b16 %v85
  %v419 = vunpack.c.l.b16 %v86
  %v420 = vunpack.c.l.b16 %v87
  %v421 = vunpack.c.l.b16 %v88
  %v422 = vunpack.c.l.b16 %v89
  %v423 = vunpack.c.l.b16 %v90
  %v424 = vunpack.c.l.b16 %v91
  %v425 = vunpack.c.l.b16 %v92
  %v426 = vunpack.c.l.b16 %v93
  %v427 = vunpack.c.l.b16 %v94
  %v428 = vunpack.c.l.b16 %v95
  %v429 = vunpack.c.l.b16 %v96
  %v430 = vunpack.c.l.b16 %v97
  %v431 = vpack.c.b16 %v413, %v412
  %v432 = vpack.c.b16 %v415, %v414
  %v433 = vpack.c.b16 %v417, %v416
  %v434 = vpack.c.b16 %v419, %v418
  %v435 = vpack.c.b16 %v421, %v420
  %v436 = vpack.c.b16 %v423, %v422
  %v437 = vpack.c.b16 %v425, %v424
  %v438 = vpack.c.b16 %v427, %v426
  %v439 = vpack.c.b16 %v429, %v428
  %v440 = vpack.c.b16 %v430, %v430
  %vm450 = vcmask 154624
  %v452 = vsel %vm450, %v298, 0
  %v455 = vsel %vm450, %v300, 0
  %v458 = vsel %vm450, %v302, 0
  %v461 = vsel %vm450, %v304, 0
  %v464 = vsel %vm450, %v306, 0
  %v467 = vsel %vm450, %v308, 0
  %v470 = vsel %vm450, %v310, 0
  %v473 = vsel %vm450, %v312, 0
  %v476 = vsel %vm450, %v314, 0
  %v479 = vsel %vm450, %v316, 0
  %v482 = vsel %vm450, %v318, 0
  %v485 = vsel %vm450, %v320, 0
  %v488 = vsel %vm450, %v322, 0
  %v491 = vsel %vm450, %v324, 0
  %v494 = vsel %vm450, %v326, 0
  %v497 = vsel %vm450, %v328, 0
  %v500 = vsel %vm450, %v330, 0
  %v503 = vsel %vm450, %v332, 0
  %v506 = vsel %vm450, %v334, 0
  %v509 = vsel %vm450, %v336, 0
  %v512 = vsel %vm450, %v338, 0
  %v515 = vsel %vm450, %v340, 0
  %v518 = vsel %vm450, %v342, 0
  %v521 = vsel %vm450, %v344, 0
  %v524 = vsel %vm450, %v346, 0
  %v527 = vsel %vm450, %v348, 0
  %v530 = vsel %vm450, %v350, 0
  %v533 = vsel %vm450, %v352, 0
  %v536 = vsel %vm450, %v354, 0
  %v539 = vsel %vm450, %v356, 0
  %v542 = vsel %vm450, %v358, 0
  %v545 = vsel %vm450, %v360, 0
  %vm547 = vcmask 1040384
  %vm548 = vcmask 1041408
  %v549 = vsel %vm547, 4294967295, 65535
  %v550 = vsel %vm548, %v549, 0
  %v552 = vand.u32 %v440, %v550
  %554 = vmatprep.subr.bf16.mxu0 0
  %555 = vmatpush1.bf16.msra.mxu0 %v438
  %556 = vmatprep.subr.bf16.mxu0 0
  %557 = vmatpush1.bf16.msra.mxu0 %v437
  %558 = vmatprep.subr.bf16.mxu0 0
  %559 = vmatpush1.bf16.msra.mxu0 %v436
  %560 = vmatprep.subr.bf16.mxu0 0
  %561 = vmatpush1.bf16.msra.mxu0 %v435
  %562 = vmatprep.subr.bf16.mxu0 0
  %563 = vmatpush1.bf16.msra.mxu0 %v434
  %564 = vmatprep.subr.bf16.mxu0 0
  %565 = vmatpush1.bf16.msra.mxu0 %v433
  %566 = vmatprep.subr.bf16.mxu0 0
  %567 = vmatpush1.bf16.msra.mxu0 %v432
  %568 = vmatprep.subr.bf16.mxu0 0
  %569 = vmatpush1.bf16.msra.mxu0 %v431
  %570 = vmatprep.subr.bf16.mxu0 0
  %571 = vmatpush2.bf16.msra.mxu0 0
  %572 = vmatprep.subr.bf16.mxu0 0
  %573 = vmatpush2.bf16.msra.mxu0 0
  %574 = vmatprep.subr.bf16.mxu0 0
  %575 = vmatpush2.bf16.msra.mxu0 0
  %576 = vmatprep.subr.bf16.mxu0 0
  %577 = vmatpush2.bf16.msra.mxu0 0
  %578 = vmatprep.subr.bf16.mxu0 0
  %579 = vmatpush2.bf16.msra.mxu0 0
  %580 = vmatprep.subr.bf16.mxu0 0
  %581 = vmatpush2.bf16.msra.mxu0 0
  %582 = vmatprep.subr.bf16.mxu0 0
  %583 = vmatpush2.bf16.msra.mxu0 %v552
  %584 = vmatprep.subr.bf16.mxu0 0
  %585 = vmatpush2.bf16.msra.mxu0 %v439
  %586 = vmatprep.mubr.bf16.mxu0 %v452
  %587 = vmatmul.mubr.bf16.gmra.mxu0 %v297
  %v588 = vpop.f32.mrf.mxu0
  %v589 = vadd.f32 %v103, %v588
  %v590 = vpop.f32.mrf.mxu0
  %v591 = vpop.f32.mrf.mxu0
  %v592 = vadd.f32 %v103, %v591
  %v593 = vpop.f32.mrf.mxu0
  %594 = vmatprep.mubr.bf16.mxu0 %v455
  %595 = vmatmul.mubr.bf16.gmra.mxu0 %v299
  %v596 = vpop.f32.mrf.mxu0
  %v597 = vadd.f32 %v103, %v596
  %v598 = vpop.f32.mrf.mxu0
  %v599 = vpop.f32.mrf.mxu0
  %v600 = vadd.f32 %v103, %v599
  %v601 = vpop.f32.mrf.mxu0
  %602 = vmatprep.mubr.bf16.mxu0 %v458
  %603 = vmatmul.mubr.bf16.gmra.mxu0 %v301
  %v604 = vpop.f32.mrf.mxu0
  %v605 = vadd.f32 %v103, %v604
  %v606 = vpop.f32.mrf.mxu0
  %v607 = vpop.f32.mrf.mxu0
  %v608 = vadd.f32 %v103, %v607
  %v609 = vpop.f32.mrf.mxu0
  %610 = vmatprep.mubr.bf16.mxu0 %v461
  %611 = vmatmul.mubr.bf16.gmra.mxu0 %v303
  %v612 = vpop.f32.mrf.mxu0
  %v613 = vadd.f32 %v103, %v612
  %v614 = vpop.f32.mrf.mxu0
  %v615 = vpop.f32.mrf.mxu0
  %v616 = vadd.f32 %v103, %v615
  %v617 = vpop.f32.mrf.mxu0
  %618 = vmatprep.mubr.bf16.mxu0 %v464
  %619 = vmatmul.mubr.bf16.gmra.mxu0 %v305
  %v620 = vpop.f32.mrf.mxu0
  %v621 = vadd.f32 %v103, %v620
  %v622 = vpop.f32.mrf.mxu0
  %v623 = vpop.f32.mrf.mxu0
  %v624 = vadd.f32 %v103, %v623
  %v625 = vpop.f32.mrf.mxu0
  %626 = vmatprep.mubr.bf16.mxu0 %v467
  %627 = vmatmul.mubr.bf16.gmra.mxu0 %v307
  %v628 = vpop.f32.mrf.mxu0
  %v629 = vadd.f32 %v103, %v628
  %v630 = vpop.f32.mrf.mxu0
  %v631 = vpop.f32.mrf.mxu0
  %v632 = vadd.f32 %v103, %v631
  %v633 = vpop.f32.mrf.mxu0
  %634 = vmatprep.mubr.bf16.mxu0 %v470
  %635 = vmatmul.mubr.bf16.gmra.mxu0 %v309
  %v636 = vpop.f32.mrf.mxu0
  %v637 = vadd.f32 %v103, %v636
  %v638 = vpop.f32.mrf.mxu0
  %v639 = vpop.f32.mrf.mxu0
  %v640 = vadd.f32 %v103, %v639
  %v641 = vpop.f32.mrf.mxu0
  %642 = vmatprep.mubr.bf16.mxu0 %v473
  %643 = vmatmul.mubr.bf16.gmra.mxu0 %v311
  %v644 = vpop.f32.mrf.mxu0
  %v645 = vadd.f32 %v103, %v644
  %v646 = vpop.f32.mrf.mxu0
  %v647 = vpop.f32.mrf.mxu0
  %v648 = vadd.f32 %v103, %v647
  %v649 = vpop.f32.mrf.mxu0
  %650 = vmatprep.mubr.bf16.mxu0 %v476
  %651 = vmatmul.mubr.bf16.gmra.mxu0 %v313
  %v652 = vpop.f32.mrf.mxu0
  %v653 = vadd.f32 %v103, %v652
  %v654 = vpop.f32.mrf.mxu0
  %v655 = vpop.f32.mrf.mxu0
  %v656 = vadd.f32 %v103, %v655
  %v657 = vpop.f32.mrf.mxu0
  %658 = vmatprep.mubr.bf16.mxu0 %v479
  %659 = vmatmul.mubr.bf16.gmra.mxu0 %v315
  %v660 = vpop.f32.mrf.mxu0
  %v661 = vadd.f32 %v103, %v660
  %v662 = vpop.f32.mrf.mxu0
  %v663 = vpop.f32.mrf.mxu0
  %v664 = vadd.f32 %v103, %v663
  %v665 = vpop.f32.mrf.mxu0
  %666 = vmatprep.mubr.bf16.mxu0 %v482
  %667 = vmatmul.mubr.bf16.gmra.mxu0 %v317
  %v668 = vpop.f32.mrf.mxu0
  %v669 = vadd.f32 %v103, %v668
  %v670 = vpop.f32.mrf.mxu0
  %v671 = vpop.f32.mrf.mxu0
  %v672 = vadd.f32 %v103, %v671
  %v673 = vpop.f32.mrf.mxu0
  %674 = vmatprep.mubr.bf16.mxu0 %v485
  %675 = vmatmul.mubr.bf16.gmra.mxu0 %v319
  %v676 = vpop.f32.mrf.mxu0
  %v677 = vadd.f32 %v103, %v676
  %v678 = vpop.f32.mrf.mxu0
  %v679 = vpop.f32.mrf.mxu0
  %v680 = vadd.f32 %v103, %v679
  %v681 = vpop.f32.mrf.mxu0
  %682 = vmatprep.mubr.bf16.mxu0 %v488
  %683 = vmatmul.mubr.bf16.gmra.mxu0 %v321
  %v684 = vpop.f32.mrf.mxu0
  %v685 = vadd.f32 %v103, %v684
  %v686 = vpop.f32.mrf.mxu0
  %v687 = vpop.f32.mrf.mxu0
  %v688 = vadd.f32 %v103, %v687
  %v689 = vpop.f32.mrf.mxu0
  %690 = vmatprep.mubr.bf16.mxu0 %v491
  %691 = vmatmul.mubr.bf16.gmra.mxu0 %v323
  %v692 = vpop.f32.mrf.mxu0
  %v693 = vadd.f32 %v103, %v692
  %v694 = vpop.f32.mrf.mxu0
  %v695 = vpop.f32.mrf.mxu0
  %v696 = vadd.f32 %v103, %v695
  %v697 = vpop.f32.mrf.mxu0
  %698 = vmatprep.mubr.bf16.mxu0 %v494
  %699 = vmatmul.mubr.bf16.gmra.mxu0 %v325
  %v700 = vpop.f32.mrf.mxu0
  %v701 = vadd.f32 %v103, %v700
  %v702 = vpop.f32.mrf.mxu0
  %v703 = vpop.f32.mrf.mxu0
  %v704 = vadd.f32 %v103, %v703
  %v705 = vpop.f32.mrf.mxu0
  %706 = vmatprep.mubr.bf16.mxu0 %v497
  %707 = vmatmul.mubr.bf16.gmra.mxu0 %v327
  %v708 = vpop.f32.mrf.mxu0
  %v709 = vadd.f32 %v103, %v708
  %v710 = vpop.f32.mrf.mxu0
  %v711 = vpop.f32.mrf.mxu0
  %v712 = vadd.f32 %v103, %v711
  %v713 = vpop.f32.mrf.mxu0
  %714 = vmatprep.mubr.bf16.mxu0 %v500
  %715 = vmatmul.mubr.bf16.gmra.mxu0 %v329
  %v716 = vpop.f32.mrf.mxu0
  %v717 = vadd.f32 %v103, %v716
  %v718 = vpop.f32.mrf.mxu0
  %v719 = vpop.f32.mrf.mxu0
  %v720 = vadd.f32 %v103, %v719
  %v721 = vpop.f32.mrf.mxu0
  %722 = vmatprep.mubr.bf16.mxu0 %v503
  %723 = vmatmul.mubr.bf16.gmra.mxu0 %v331
  %v724 = vpop.f32.mrf.mxu0
  %v725 = vadd.f32 %v103, %v724
  %v726 = vpop.f32.mrf.mxu0
  %v727 = vpop.f32.mrf.mxu0
  %v728 = vadd.f32 %v103, %v727
  %v729 = vpop.f32.mrf.mxu0
  %730 = vmatprep.mubr.bf16.mxu0 %v506
  %731 = vmatmul.mubr.bf16.gmra.mxu0 %v333
  %v732 = vpop.f32.mrf.mxu0
  %v733 = vadd.f32 %v103, %v732
  %v734 = vpop.f32.mrf.mxu0
  %v735 = vpop.f32.mrf.mxu0
  %v736 = vadd.f32 %v103, %v735
  %v737 = vpop.f32.mrf.mxu0
  %738 = vmatprep.mubr.bf16.mxu0 %v509
  %739 = vmatmul.mubr.bf16.gmra.mxu0 %v335
  %v740 = vpop.f32.mrf.mxu0
  %v741 = vadd.f32 %v103, %v740
  %v742 = vpop.f32.mrf.mxu0
  %v743 = vpop.f32.mrf.mxu0
  %v744 = vadd.f32 %v103, %v743
  %v745 = vpop.f32.mrf.mxu0
  %746 = vmatprep.mubr.bf16.mxu0 %v512
  %747 = vmatmul.mubr.bf16.gmra.mxu0 %v337
  %v748 = vpop.f32.mrf.mxu0
  %v749 = vadd.f32 %v103, %v748
  %v750 = vpop.f32.mrf.mxu0
  %v751 = vpop.f32.mrf.mxu0
  %v752 = vadd.f32 %v103, %v751
  %v753 = vpop.f32.mrf.mxu0
  %754 = vmatprep.mubr.bf16.mxu0 %v515
  %755 = vmatmul.mubr.bf16.gmra.mxu0 %v339
  %v756 = vpop.f32.mrf.mxu0
  %v757 = vadd.f32 %v103, %v756
  %v758 = vpop.f32.mrf.mxu0
  %v759 = vpop.f32.mrf.mxu0
  %v760 = vadd.f32 %v103, %v759
  %v761 = vpop.f32.mrf.mxu0
  %762 = vmatprep.mubr.bf16.mxu0 %v518
  %763 = vmatmul.mubr.bf16.gmra.mxu0 %v341
  %v764 = vpop.f32.mrf.mxu0
  %v765 = vadd.f32 %v103, %v764
  %v766 = vpop.f32.mrf.mxu0
  %v767 = vpop.f32.mrf.mxu0
  %v768 = vadd.f32 %v103, %v767
  %v769 = vpop.f32.mrf.mxu0
  %770 = vmatprep.mubr.bf16.mxu0 %v521
  %771 = vmatmul.mubr.bf16.gmra.mxu0 %v343
  %v772 = vpop.f32.mrf.mxu0
  %v773 = vadd.f32 %v103, %v772
  %v774 = vpop.f32.mrf.mxu0
  %v775 = vpop.f32.mrf.mxu0
  %v776 = vadd.f32 %v103, %v775
  %v777 = vpop.f32.mrf.mxu0
  %778 = vmatprep.mubr.bf16.mxu0 %v524
  %779 = vmatmul.mubr.bf16.gmra.mxu0 %v345
  %v780 = vpop.f32.mrf.mxu0
  %v781 = vadd.f32 %v103, %v780
  %v782 = vpop.f32.mrf.mxu0
  %v783 = vpop.f32.mrf.mxu0
  %v784 = vadd.f32 %v103, %v783
  %v785 = vpop.f32.mrf.mxu0
  %786 = vmatprep.mubr.bf16.mxu0 %v527
  %787 = vmatmul.mubr.bf16.gmra.mxu0 %v347
  %v788 = vpop.f32.mrf.mxu0
  %v789 = vadd.f32 %v103, %v788
  %v790 = vpop.f32.mrf.mxu0
  %v791 = vpop.f32.mrf.mxu0
  %v792 = vadd.f32 %v103, %v791
  %v793 = vpop.f32.mrf.mxu0
  %794 = vmatprep.mubr.bf16.mxu0 %v530
  %795 = vmatmul.mubr.bf16.gmra.mxu0 %v349
  %v796 = vpop.f32.mrf.mxu0
  %v797 = vadd.f32 %v103, %v796
  %v798 = vpop.f32.mrf.mxu0
  %v799 = vpop.f32.mrf.mxu0
  %v800 = vadd.f32 %v103, %v799
  %v801 = vpop.f32.mrf.mxu0
  %802 = vmatprep.mubr.bf16.mxu0 %v533
  %803 = vmatmul.mubr.bf16.gmra.mxu0 %v351
  %v804 = vpop.f32.mrf.mxu0
  %v805 = vadd.f32 %v103, %v804
  %v806 = vpop.f32.mrf.mxu0
  %v807 = vpop.f32.mrf.mxu0
  %v808 = vadd.f32 %v103, %v807
  %v809 = vpop.f32.mrf.mxu0
  %810 = vmatprep.mubr.bf16.mxu0 %v536
  %811 = vmatmul.mubr.bf16.gmra.mxu0 %v353
  %v812 = vpop.f32.mrf.mxu0
  %v813 = vadd.f32 %v103, %v812
  %v814 = vpop.f32.mrf.mxu0
  %v815 = vpop.f32.mrf.mxu0
  %v816 = vadd.f32 %v103, %v815
  %v817 = vpop.f32.mrf.mxu0
  %818 = vmatprep.mubr.bf16.mxu0 %v539
  %819 = vmatmul.mubr.bf16.gmra.mxu0 %v355
  %v820 = vpop.f32.mrf.mxu0
  %v821 = vadd.f32 %v103, %v820
  %v822 = vpop.f32.mrf.mxu0
  %v823 = vpop.f32.mrf.mxu0
  %v824 = vadd.f32 %v103, %v823
  %v825 = vpop.f32.mrf.mxu0
  %826 = vmatprep.mubr.bf16.mxu0 %v542
  %827 = vmatmul.mubr.bf16.gmra.mxu0 %v357
  %v828 = vpop.f32.mrf.mxu0
  %v829 = vadd.f32 %v103, %v828
  %v830 = vpop.f32.mrf.mxu0
  %v831 = vpop.f32.mrf.mxu0
  %v832 = vadd.f32 %v103, %v831
  %v833 = vpop.f32.mrf.mxu0
  %834 = vmatprep.mubr.bf16.mxu0 %v545
  %835 = vmatmul.mubr.bf16.gmra.mxu0 %v359
  %v836 = vpop.f32.mrf.mxu0
  %v837 = vadd.f32 %v103, %v836
  %v838 = vpop.f32.mrf.mxu0
  %v839 = vpop.f32.mrf.mxu0
  %v840 = vadd.f32 %v103, %v839
  %v841 = vpop.f32.mrf.mxu0
  %842 = vdwg.mxu0
  %v843 = vmax.f32 %v589, 0.0
  %v844 = vmax.f32 %v592, 0.0
  %v845 = vmax.f32 %v597, 0.0
  %v846 = vmax.f32 %v600, 0.0
  %v847 = vmax.f32 %v605, 0.0
  %v848 = vmax.f32 %v608, 0.0
  %v849 = vmax.f32 %v613, 0.0
  %v850 = vmax.f32 %v616, 0.0
  %v851 = vmax.f32 %v621, 0.0
  %v852 = vmax.f32 %v624, 0.0
  %v853 = vmax.f32 %v629, 0.0
  %v854 = vmax.f32 %v632, 0.0
  %v855 = vmax.f32 %v637, 0.0
  %v856 = vmax.f32 %v640, 0.0
  %v857 = vmax.f32 %v645, 0.0
  %v858 = vmax.f32 %v648, 0.0
  %v859 = vmax.f32 %v653, 0.0
  %v860 = vmax.f32 %v656, 0.0
  %v861 = vmax.f32 %v661, 0.0
  %v862 = vmax.f32 %v664, 0.0
  %v863 = vmax.f32 %v669, 0.0
  %v864 = vmax.f32 %v672, 0.0
  %v865 = vmax.f32 %v677, 0.0
  %v866 = vmax.f32 %v680, 0.0
  %v867 = vmax.f32 %v685, 0.0
  %v868 = vmax.f32 %v688, 0.0
  %v869 = vmax.f32 %v693, 0.0
  %v870 = vmax.f32 %v696, 0.0
  %v871 = vmax.f32 %v701, 0.0
  %v872 = vmax.f32 %v704, 0.0
  %v873 = vmax.f32 %v709, 0.0
  %v874 = vmax.f32 %v712, 0.0
  %v875 = vmax.f32 %v717, 0.0
  %v876 = vmax.f32 %v720, 0.0
  %v877 = vmax.f32 %v725, 0.0
  %v878 = vmax.f32 %v728, 0.0
  %v879 = vmax.f32 %v733, 0.0
  %v880 = vmax.f32 %v736, 0.0
  %v881 = vmax.f32 %v741, 0.0
  %v882 = vmax.f32 %v744, 0.0
  %v883 = vmax.f32 %v749, 0.0
  %v884 = vmax.f32 %v752, 0.0
  %v885 = vmax.f32 %v757, 0.0
  %v886 = vmax.f32 %v760, 0.0
  %v887 = vmax.f32 %v765, 0.0
  %v888 = vmax.f32 %v768, 0.0
  %v889 = vmax.f32 %v773, 0.0
  %v890 = vmax.f32 %v776, 0.0
  %v891 = vmax.f32 %v781, 0.0
  %v892 = vmax.f32 %v784, 0.0
  %v893 = vmax.f32 %v789, 0.0
  %v894 = vmax.f32 %v792, 0.0
  %v895 = vmax.f32 %v797, 0.0
  %v896 = vmax.f32 %v800, 0.0
  %v897 = vmax.f32 %v805, 0.0
  %v898 = vmax.f32 %v808, 0.0
  %v899 = vmax.f32 %v813, 0.0
  %v900 = vmax.f32 %v816, 0.0
  %v901 = vmax.f32 %v821, 0.0
  %v902 = vmax.f32 %v824, 0.0
  %v903 = vmax.f32 %v829, 0.0
  %v904 = vmax.f32 %v832, 0.0
  %v905 = vmax.f32 %v837, 0.0
  %v906 = vmax.f32 %v840, 0.0
  %v907 = vpack.c.bf16 %v844, %v843
  %v908 = vpack.c.bf16 %v846, %v845
  %v909 = vpack.c.bf16 %v848, %v847
  %v910 = vpack.c.bf16 %v850, %v849
  %v911 = vpack.c.bf16 %v852, %v851
  %v912 = vpack.c.bf16 %v854, %v853
  %v913 = vpack.c.bf16 %v856, %v855
  %v914 = vpack.c.bf16 %v858, %v857
  %v915 = vpack.c.bf16 %v860, %v859
  %v916 = vpack.c.bf16 %v862, %v861
  %v917 = vpack.c.bf16 %v864, %v863
  %v918 = vpack.c.bf16 %v866, %v865
  %v919 = vpack.c.bf16 %v868, %v867
  %v920 = vpack.c.bf16 %v870, %v869
  %v921 = vpack.c.bf16 %v872, %v871
  %v922 = vpack.c.bf16 %v874, %v873
  %v923 = vpack.c.bf16 %v876, %v875
  %v924 = vpack.c.bf16 %v878, %v877
  %v925 = vpack.c.bf16 %v880, %v879
  %v926 = vpack.c.bf16 %v882, %v881
  %v927 = vpack.c.bf16 %v884, %v883
  %v928 = vpack.c.bf16 %v886, %v885
  %v929 = vpack.c.bf16 %v888, %v887
  %v930 = vpack.c.bf16 %v890, %v889
  %v931 = vpack.c.bf16 %v892, %v891
  %v932 = vpack.c.bf16 %v894, %v893
  %v933 = vpack.c.bf16 %v896, %v895
  %v934 = vpack.c.bf16 %v898, %v897
  %v935 = vpack.c.bf16 %v900, %v899
  %v936 = vpack.c.bf16 %v902, %v901
  %v937 = vpack.c.bf16 %v904, %v903
  %v938 = vpack.c.bf16 %v906, %v905
  %v971 = vunpack.c.l.b16 %v907
  %v972 = vunpack.c.h.b16 %v907
  %v973 = vunpack.c.l.b16 %v908
  %v974 = vunpack.c.h.b16 %v908
  %v975 = vunpack.c.l.b16 %v909
  %v976 = vunpack.c.h.b16 %v909
  %v977 = vunpack.c.l.b16 %v910
  %v978 = vunpack.c.h.b16 %v910
  %v979 = vunpack.c.l.b16 %v911
  %v980 = vunpack.c.h.b16 %v911
  %v981 = vunpack.c.l.b16 %v912
  %v982 = vunpack.c.h.b16 %v912
  %v983 = vunpack.c.l.b16 %v913
  %v984 = vunpack.c.h.b16 %v913
  %v985 = vunpack.c.l.b16 %v914
  %v986 = vunpack.c.h.b16 %v914
  %v987 = vunpack.c.l.b16 %v915
  %v988 = vunpack.c.h.b16 %v915
  %v989 = vunpack.c.l.b16 %v916
  %v990 = vunpack.c.h.b16 %v916
  %v991 = vunpack.c.l.b16 %v917
  %v992 = vunpack.c.h.b16 %v917
  %v993 = vunpack.c.l.b16 %v918
  %v994 = vunpack.c.h.b16 %v918
  %v995 = vunpack.c.l.b16 %v919
  %v996 = vunpack.c.h.b16 %v919
  %v997 = vunpack.c.l.b16 %v920
  %v998 = vunpack.c.h.b16 %v920
  %v999 = vunpack.c.l.b16 %v921
  %v1000 = vunpack.c.h.b16 %v921
  %v1001 = vunpack.c.l.b16 %v922
  %v1002 = vunpack.c.h.b16 %v922
  %v1003 = vunpack.c.l.b16 %v923
  %v1004 = vunpack.c.h.b16 %v923
  %v1005 = vunpack.c.l.b16 %v924
  %v1006 = vunpack.c.h.b16 %v924
  %v1007 = vunpack.c.l.b16 %v925
  %v1008 = vunpack.c.h.b16 %v925
  %v1009 = vunpack.c.l.b16 %v926
  %v1010 = vunpack.c.h.b16 %v926
  %v1011 = vunpack.c.l.b16 %v927
  %v1012 = vunpack.c.h.b16 %v927
  %v1013 = vunpack.c.l.b16 %v928
  %v1014 = vunpack.c.h.b16 %v928
  %v1015 = vunpack.c.l.b16 %v929
  %v1016 = vunpack.c.h.b16 %v929
  %v1017 = vunpack.c.l.b16 %v930
  %v1018 = vunpack.c.h.b16 %v930
  %v1019 = vunpack.c.l.b16 %v931
  %v1020 = vunpack.c.h.b16 %v931
  %v1021 = vunpack.c.l.b16 %v932
  %v1022 = vunpack.c.h.b16 %v932
  %v1023 = vunpack.c.l.b16 %v933
  %v1024 = vunpack.c.h.b16 %v933
  %v1025 = vunpack.c.l.b16 %v934
  %v1026 = vunpack.c.h.b16 %v934
  %v1027 = vunpack.c.l.b16 %v935
  %v1028 = vunpack.c.h.b16 %v935
  %v1029 = vunpack.c.l.b16 %v936
  %v1030 = vunpack.c.h.b16 %v936
  %v1031 = vunpack.c.l.b16 %v937
  %v1032 = vunpack.c.h.b16 %v937
  %v1033 = vunpack.c.l.b16 %v938
  %v1034 = vunpack.c.h.b16 %v938
  %v1035 = vpack.c.b16 %v971, %v971
  %v1036 = vpack.c.b16 %v972, %v972
  %v1037 = vpack.c.b16 %v973, %v973
  %v1038 = vpack.c.b16 %v974, %v974
  %v1039 = vpack.c.b16 %v975, %v975
  %v1040 = vpack.c.b16 %v976, %v976
  %v1041 = vpack.c.b16 %v977, %v977
  %v1042 = vpack.c.b16 %v978, %v978
  %v1043 = vpack.c.b16 %v979, %v979
  %v1044 = vpack.c.b16 %v980, %v980
  %v1045 = vpack.c.b16 %v981, %v981
  %v1046 = vpack.c.b16 %v982, %v982
  %v1047 = vpack.c.b16 %v983, %v983
  %v1048 = vpack.c.b16 %v984, %v984
  %v1049 = vpack.c.b16 %v985, %v985
  %v1050 = vpack.c.b16 %v986, %v986
  %v1051 = vpack.c.b16 %v987, %v987
  %v1052 = vpack.c.b16 %v988, %v988
  %v1053 = vpack.c.b16 %v989, %v989
  %v1054 = vpack.c.b16 %v990, %v990
  %v1055 = vpack.c.b16 %v991, %v991
  %v1056 = vpack.c.b16 %v992, %v992
  %v1057 = vpack.c.b16 %v993, %v993
  %v1058 = vpack.c.b16 %v994, %v994
  %v1059 = vpack.c.b16 %v995, %v995
  %v1060 = vpack.c.b16 %v996, %v996
  %v1061 = vpack.c.b16 %v997, %v997
  %v1062 = vpack.c.b16 %v998, %v998
  %v1063 = vpack.c.b16 %v999, %v999
  %v1064 = vpack.c.b16 %v1000, %v1000
  %v1065 = vpack.c.b16 %v1001, %v1001
  %v1066 = vpack.c.b16 %v1002, %v1002
  %v1067 = vpack.c.b16 %v1003, %v1003
  %v1068 = vpack.c.b16 %v1004, %v1004
  %v1069 = vpack.c.b16 %v1005, %v1005
  %v1070 = vpack.c.b16 %v1006, %v1006
  %v1071 = vpack.c.b16 %v1007, %v1007
  %v1072 = vpack.c.b16 %v1008, %v1008
  %v1073 = vpack.c.b16 %v1009, %v1009
  %v1074 = vpack.c.b16 %v1010, %v1010
  %v1075 = vpack.c.b16 %v1011, %v1011
  %v1076 = vpack.c.b16 %v1012, %v1012
  %v1077 = vpack.c.b16 %v1013, %v1013
  %v1078 = vpack.c.b16 %v1014, %v1014
  %v1079 = vpack.c.b16 %v1015, %v1015
  %v1080 = vpack.c.b16 %v1016, %v1016
  %v1081 = vpack.c.b16 %v1017, %v1017
  %v1082 = vpack.c.b16 %v1018, %v1018
  %v1083 = vpack.c.b16 %v1019, %v1019
  %v1084 = vpack.c.b16 %v1020, %v1020
  %v1085 = vpack.c.b16 %v1021, %v1021
  %v1086 = vpack.c.b16 %v1022, %v1022
  %v1087 = vpack.c.b16 %v1023, %v1023
  %v1088 = vpack.c.b16 %v1024, %v1024
  %v1089 = vpack.c.b16 %v1025, %v1025
  %v1090 = vpack.c.b16 %v1026, %v1026
  %v1091 = vpack.c.b16 %v1027, %v1027
  %v1092 = vpack.c.b16 %v1028, %v1028
  %v1093 = vpack.c.b16 %v1029, %v1029
  %v1094 = vpack.c.b16 %v1030, %v1030
  %v1095 = vpack.c.b16 %v1031, %v1031
  %v1096 = vpack.c.b16 %v1032, %v1032
  %v1097 = vpack.c.b16 %v1033, %v1033
  %v1098 = vpack.c.b16 %v1034, %v1034
  %vm1163 = vcmask 519168
  %1164 = vst.msk [vmem:[%s3] sm:$0xf] %vm1163, %v1035
  %1165 = vst.msk [vmem:[%s3 + $0x4] sm:$0xf] %vm1163, %v1036
  %1166 = vst.msk [vmem:[%s3 + $0x8] sm:$0xf] %vm1163, %v1037
  %1167 = vst.msk [vmem:[%s3 + $0xc] sm:$0xf] %vm1163, %v1038
  %1168 = vst.msk [vmem:[%s3 + $0x10] sm:$0xf] %vm1163, %v1039
  %1169 = vst.msk [vmem:[%s3 + $0x14] sm:$0xf] %vm1163, %v1040
  %1170 = vst.msk [vmem:[%s3 + $0x18] sm:$0xf] %vm1163, %v1041
  %1171 = vst.msk [vmem:[%s3 + $0x1c] sm:$0xf] %vm1163, %v1042
  %1172 = vst.msk [vmem:[%s3 + $0x20] sm:$0xf] %vm1163, %v1043
  %1173 = vst.msk [vmem:[%s3 + $0x24] sm:$0xf] %vm1163, %v1044
  %1174 = vst.msk [vmem:[%s3 + $0x28] sm:$0xf] %vm1163, %v1045
  %1175 = vst.msk [vmem:[%s3 + $0x2c] sm:$0xf] %vm1163, %v1046
  %1176 = vst.msk [vmem:[%s3 + $0x30] sm:$0xf] %vm1163, %v1047
  %1177 = vst.msk [vmem:[%s3 + $0x34] sm:$0xf] %vm1163, %v1048
  %1178 = vst.msk [vmem:[%s3 + $0x38] sm:$0xf] %vm1163, %v1049
  %1179 = vst.msk [vmem:[%s3 + $0x3c] sm:$0xf] %vm1163, %v1050
  %1180 = vst.msk [vmem:[%s3 + $0x40] sm:$0xf] %vm1163, %v1051
  %1181 = vst.msk [vmem:[%s3 + $0x44] sm:$0xf] %vm1163, %v1052
  %1182 = vst.msk [vmem:[%s3 + $0x48] sm:$0xf] %vm1163, %v1053
  %1183 = vst.msk [vmem:[%s3 + $0x4c] sm:$0xf] %vm1163, %v1054
  %1184 = vst.msk [vmem:[%s3 + $0x50] sm:$0xf] %vm1163, %v1055
  %1185 = vst.msk [vmem:[%s3 + $0x54] sm:$0xf] %vm1163, %v1056
  %1186 = vst.msk [vmem:[%s3 + $0x58] sm:$0xf] %vm1163, %v1057
  %1187 = vst.msk [vmem:[%s3 + $0x5c] sm:$0xf] %vm1163, %v1058
  %1188 = vst.msk [vmem:[%s3 + $0x60] sm:$0xf] %vm1163, %v1059
  %1189 = vst.msk [vmem:[%s3 + $0x64] sm:$0xf] %vm1163, %v1060
  %1190 = vst.msk [vmem:[%s3 + $0x68] sm:$0xf] %vm1163, %v1061
  %1191 = vst.msk [vmem:[%s3 + $0x6c] sm:$0xf] %vm1163, %v1062
  %1192 = vst.msk [vmem:[%s3 + $0x70] sm:$0xf] %vm1163, %v1063
  %1193 = vst.msk [vmem:[%s3 + $0x74] sm:$0xf] %vm1163, %v1064
  %1194 = vst.msk [vmem:[%s3 + $0x78] sm:$0xf] %vm1163, %v1065
  %1195 = vst.msk [vmem:[%s3 + $0x7c] sm:$0xf] %vm1163, %v1066
  %1196 = vst.msk [vmem:[%s3 + $0x80] sm:$0xf] %vm1163, %v1067
  %1197 = vst.msk [vmem:[%s3 + $0x84] sm:$0xf] %vm1163, %v1068
  %1198 = vst.msk [vmem:[%s3 + $0x88] sm:$0xf] %vm1163, %v1069
  %1199 = vst.msk [vmem:[%s3 + $0x8c] sm:$0xf] %vm1163, %v1070
  %1200 = vst.msk [vmem:[%s3 + $0x90] sm:$0xf] %vm1163, %v1071
  %1201 = vst.msk [vmem:[%s3 + $0x94] sm:$0xf] %vm1163, %v1072
  %1202 = vst.msk [vmem:[%s3 + $0x98] sm:$0xf] %vm1163, %v1073
  %1203 = vst.msk [vmem:[%s3 + $0x9c] sm:$0xf] %vm1163, %v1074
  %1204 = vst.msk [vmem:[%s3 + $0xa0] sm:$0xf] %vm1163, %v1075
  %1205 = vst.msk [vmem:[%s3 + $0xa4] sm:$0xf] %vm1163, %v1076
  %1206 = vst.msk [vmem:[%s3 + $0xa8] sm:$0xf] %vm1163, %v1077
  %1207 = vst.msk [vmem:[%s3 + $0xac] sm:$0xf] %vm1163, %v1078
  %1208 = vst.msk [vmem:[%s3 + $0xb0] sm:$0xf] %vm1163, %v1079
  %1209 = vst.msk [vmem:[%s3 + $0xb4] sm:$0xf] %vm1163, %v1080
  %1210 = vst.msk [vmem:[%s3 + $0xb8] sm:$0xf] %vm1163, %v1081
  %1211 = vst.msk [vmem:[%s3 + $0xbc] sm:$0xf] %vm1163, %v1082
  %1212 = vst.msk [vmem:[%s3 + $0xc0] sm:$0xf] %vm1163, %v1083
  %1213 = vst.msk [vmem:[%s3 + $0xc4] sm:$0xf] %vm1163, %v1084
  %1214 = vst.msk [vmem:[%s3 + $0xc8] sm:$0xf] %vm1163, %v1085
  %1215 = vst.msk [vmem:[%s3 + $0xcc] sm:$0xf] %vm1163, %v1086
  %1216 = vst.msk [vmem:[%s3 + $0xd0] sm:$0xf] %vm1163, %v1087
  %1217 = vst.msk [vmem:[%s3 + $0xd4] sm:$0xf] %vm1163, %v1088
  %1218 = vst.msk [vmem:[%s3 + $0xd8] sm:$0xf] %vm1163, %v1089
  %1219 = vst.msk [vmem:[%s3 + $0xdc] sm:$0xf] %vm1163, %v1090
  %1220 = vst.msk [vmem:[%s3 + $0xe0] sm:$0xf] %vm1163, %v1091
  %1221 = vst.msk [vmem:[%s3 + $0xe4] sm:$0xf] %vm1163, %v1092
  %1222 = vst.msk [vmem:[%s3 + $0xe8] sm:$0xf] %vm1163, %v1093
  %1223 = vst.msk [vmem:[%s3 + $0xec] sm:$0xf] %vm1163, %v1094
  %1224 = vst.msk [vmem:[%s3 + $0xf0] sm:$0xf] %vm1163, %v1095
  %1225 = vst.msk [vmem:[%s3 + $0xf4] sm:$0xf] %vm1163, %v1096
  %1226 = vst.msk [vmem:[%s3 + $0xf8] sm:$0xf] %vm1163, %v1097
  %1227 = vst.msk [vmem:[%s3 + $0xfc] sm:$0xf] %vm1163, %v1098
  // Predicated region
  $region14: #{resnet152_shallow_forward.2} parent=0 // pred_check
    _
  $region15: #{resnet152_shallow_forward.2} parent=0 // pred_check_branch
    %1229 = sbr.rel (0) target = $region17
  $region16: #{resnet152_shallow_forward.2} parent=0 // pred_region
    _
  $region17: #{resnet152_shallow_forward.2} parent=0 // pred_fallthru
    _
  // Predicated region
  $region18: #{resnet152_shallow_forward.2} parent=0 // pred_check
    _
  $region19: #{resnet152_shallow_forward.2} parent=0 // pred_check_branch
    %1231 = sbr.rel (0) target = $region21
  $region20: #{resnet152_shallow_forward.2} parent=0 // pred_region
    _
  $region21: #{resnet152_shallow_forward.2} parent=0 // pred_fallthru
    _

</llo_original>
